<compile_context>
chip_gen: v6e
topology: v6e:2x2x1
jax: 0.10.0
libtpu: 0.0.40
codegen_flags: <defaults>
</compile_context>

<pallas_src>
import functools

import jax
import jax.numpy as jnp
from jax.experimental import pallas as pl
from jax.experimental.pallas import tpu as pltpu


def _round_up(x, m):
    return (x + m - 1) // m * m


def _vmem_capacity_bytes():
    """Physical per-core VMEM, generation-aware; conservative fallback."""
    try:
        return int(pltpu.get_tpu_info().vmem_capacity_bytes)
    except Exception:
        return 64 * 1024 * 1024  # v7x per-TensorCore (smallest current gen)


def _resident_spec(shape, single_buffer):
    """BlockSpec for a grid-invariant operand (constant index_map).

    With single_buffer=True we request 1-deep buffering so the never-re-DMA'd
    weights/biases don't pay the default double-buffer VMEM footprint.
    """
    index_map = lambda i: (0,) * len(shape)
    if single_buffer:
        try:
            return pl.BlockSpec(shape, index_map, pipeline_mode=pl.Buffered(1))
        except Exception:  # older jax: no pipeline_mode / Buffered support
            pass
    return pl.BlockSpec(shape, index_map)


def _mlp_kernel(x_ref, w1_ref, b1_ref, w2_ref, b2_ref, o_ref):
    w1 = w1_ref[...]
    w2 = w2_ref[...]
    # Per-tile cast of x to the weight dtype (bf16 path -> bf16 MXU inputs with
    # f32 accumulation). Weights were cast once in the wrapper, not per step.
    x = x_ref[...].astype(w1.dtype)

    # Hidden layer: x @ W1 + b1, ReLU (bias/ReLU kept in f32).
    h = jnp.dot(x, w1, preferred_element_type=jnp.float32)
    h = jnp.maximum(h + b1_ref[...], 0.0)

    # Output layer: h @ W2 + b2.
    o = jnp.dot(h.astype(w2.dtype), w2, preferred_element_type=jnp.float32)
    o_ref[...] = (o + b2_ref[...]).astype(o_ref.dtype)


def prepare_linear_block_params(w1, b1, w2, b2, *, weights_dtype=jnp.bfloat16):
    """One-time pad + cast of the parameters (outside the per-call path).

    * input / hidden / output widths zero-padded to multiples of 128 lanes
      (numerically exact: padded W rows/cols and bias tails are zero)
    * weights cast once to `weights_dtype` (bf16 default); biases stay f32.
    """
    in_sz, hidden_sz = w1.shape
    out_sz = w2.shape[1]
    in_p = _round_up(in_sz, 128)
    hid_p = _round_up(hidden_sz, 128)
    out_p = _round_up(out_sz, 128)
    w1p = jnp.pad(w1, ((0, in_p - in_sz), (0, hid_p - hidden_sz))).astype(weights_dtype)
    w2p = jnp.pad(w2, ((0, hid_p - hidden_sz), (0, out_p - out_sz))).astype(weights_dtype)
    b1p = jnp.pad(b1, ((0, 0), (0, hid_p - hidden_sz))).astype(jnp.float32)
    b2p = jnp.pad(b2, ((0, 0), (0, out_p - out_sz))).astype(jnp.float32)
    return w1p, b1p, w2p, b2p


@functools.partial(jax.jit,
                   static_argnames=("out_sz", "block_b", "single_buffer_weights"))
def linear_block_forward(x, w1p, b1p, w2p, b2p, *, out_sz, block_b=512,
                         single_buffer_weights=True):
    """Fused 2-layer MLP forward.

    x  : (B, in_sz)                                     f32
    w1p: (in_p, hid_p)  b1p: (1, hid_p)                 prepared (padded/cast)
    w2p: (hid_p, out_p) b2p: (1, out_p)
    returns (B, out_sz)
    """
    B, in_sz = x.shape
    in_p, hid_p = w1p.shape
    out_p = w2p.shape[1]

    # Lane-dense x: pad feature dim to the (already padded) weight K.
    # Exact, because the padded W1 rows are zero.
    if in_sz != in_p:
        x = jnp.pad(x, ((0, 0), (0, in_p - in_sz)))

    # Batch tile: multiple of 128 when the batch allows (MXU-row aligned);
    # shrink so the grid has >= 4 steps when possible (>= 2 per v7x TC).
    # No full-batch pad: a partial last tile is handled by Pallas masking.
    if B >= 128:
        tb = max(128, (min(block_b, B) // 128) * 128)
        while tb > 128 and pl.cdiv(B, tb) < 4:
            tb = max(128, ((tb // 2) // 128) * 128)
    else:
        tb = _round_up(B, 8)
    grid = (pl.cdiv(B, tb),)

    # VMEM budget from the actual resident buffers (incl. in-kernel bf16
    # copies), clamped to 0.9x the physical per-core VMEM of this generation.
    wbytes = jnp.dtype(w1p.dtype).itemsize
    wbuf = 1 if single_buffer_weights else 2
    vmem_needed = (
        2 * tb * in_p * 4 + tb * in_p * wbytes             # x tile (2 bufs) + cast
        + wbuf * (in_p * hid_p + hid_p * out_p) * wbytes   # resident weights
        + wbuf * (hid_p + out_p) * 4                       # resident biases
        + tb * hid_p * (4 + wbytes)                        # hidden f32 + cast
        + 2 * tb * out_p * 4                               # out tile (2 bufs)
    )
    vmem_limit = int(min(max(int(vmem_needed * 1.5), 32 * 1024 * 1024),
                         int(0.9 * _vmem_capacity_bytes())))

    out = pl.pallas_call(
        _mlp_kernel,
        out_shape=jax.ShapeDtypeStruct((B, out_p), x.dtype),
        grid_spec=pltpu.PrefetchScalarGridSpec(
            num_scalar_prefetch=0,
            grid=grid,
            in_specs=[
                pl.BlockSpec((tb, in_p), lambda i: (i, 0)),          # x tile
                _resident_spec((in_p, hid_p), single_buffer_weights),  # W1
                _resident_spec((1, hid_p), single_buffer_weights),     # b1
                _resident_spec((hid_p, out_p), single_buffer_weights),  # W2
                _resident_spec((1, out_p), single_buffer_weights),      # b2
            ],
            out_specs=pl.BlockSpec((tb, out_p), lambda i: (i, 0)),   # lane-dense
        ),
        compiler_params=pltpu.CompilerParams(
            dimension_semantics=("parallel",),
            vmem_limit_bytes=vmem_limit,
        ),
    )(x, w1p, b1p, w2p, b2p)

    return out[:, :out_sz]


def init_linear_block_params(key, in_sz, out_sz, hidden_sz, dtype=jnp.float32):
    """Parameter init matching nn.Linear (hidden_depth=1); weights stored (in, out)."""
    k1, k2, k3, k4 = jax.random.split(key, 4)
    bound1 = 1.0 / jnp.sqrt(in_sz)
    bound2 = 1.0 / jnp.sqrt(hidden_sz)
    w1 = jax.random.uniform(k1, (in_sz, hidden_sz), dtype, -bound1, bound1)
    b1 = jax.random.uniform(k2, (1, hidden_sz), dtype, -bound1, bound1)
    w2 = jax.random.uniform(k3, (hidden_sz, out_sz), dtype, -bound2, bound2)
    b2 = jax.random.uniform(k4, (1, out_sz), dtype, -bound2, bound2)
    return w1, b1, w2, b2


def linear_block_reference_f32(x, w1, b1, w2, b2):
    """Pure-JAX f32 reference."""
    h = jnp.maximum(x @ w1 + b1, 0.0)
    return h @ w2 + b2


def linear_block_reference_bf16(x, w1, b1, w2, b2):
    """Pure-JAX reference with the same bf16-input / f32-accumulate rounding."""
    h = jnp.dot(x.astype(jnp.bfloat16), w1.astype(jnp.bfloat16),
                preferred_element_type=jnp.float32) + b1
    h = jnp.maximum(h, 0.0)
    o = jnp.dot(h.astype(jnp.bfloat16), w2.astype(jnp.bfloat16),
                preferred_element_type=jnp.float32) + b2
    return o


if __name__ == "__main__":
    # hidden_sz matches the module default (512); batch=512 with block_b=128
    # gives grid=(4,): 2 pipelined steps per v7x TensorCore, 4 on v5e/v6e.
    batch, in_sz, hidden_sz, out_sz = 512, 64, 512, 16

    key = jax.random.PRNGKey(0)
    kx, kp = jax.random.split(key)
    x = jax.random.normal(kx, (batch, in_sz), jnp.float32)
    w1, b1, w2, b2 = init_linear_block_params(kp, in_sz, out_sz, hidden_sz)

    # One-time prep (padding + bf16 cast) — NOT part of the per-call path.
    params = prepare_linear_block_params(w1, b1, w2, b2)
    params = jax.block_until_ready(params)

    try:
        out = linear_block_forward(x, *params, out_sz=out_sz, block_b=128,
                                   single_buffer_weights=True)
        out = jax.block_until_ready(out)
    except Exception:
        # Fallback if this jax build rejects single-buffered (Buffered(1)) inputs.
        out = linear_block_forward(x, *params, out_sz=out_sz, block_b=128,
                                   single_buffer_weights=False)
        out = jax.block_until_ready(out)

    ref_bf16 = linear_block_reference_bf16(x, w1, b1, w2, b2)
    ref_f32 = linear_block_reference_f32(x, w1, b1, w2, b2)

    assert out.shape == (batch, out_sz)
    # Tight check vs. a reference using the same bf16-input/f32-accumulate rounding.
    assert jnp.allclose(out, ref_bf16, atol=2e-3, rtol=2e-3), "mismatch vs bf16 reference"
    # Loose check vs. the exact f32 reference (bf16 rounding noise only).
    assert jnp.allclose(out, ref_f32, atol=5e-2, rtol=5e-2), "mismatch vs f32 reference"

    print("KERNEL_OK")
</pallas_src>

<mosaic_0001>
module attributes {stable_mosaic.version = 11 : i64} {
  func.func @_mlp_kernel(%arg0: i32, %arg1: memref<128x128xf32, #tpu.memory_space<vmem>>, %arg2: memref<128x512xbf16, #tpu.memory_space<vmem>>, %arg3: memref<1x512xf32, #tpu.memory_space<vmem>>, %arg4: memref<512x128xbf16, #tpu.memory_space<vmem>>, %arg5: memref<1x128xf32, #tpu.memory_space<vmem>>, %arg6: memref<128x128xf32, #tpu.memory_space<vmem>>) attributes {dimension_semantics = [#tpu.dimension_semantics<parallel>], iteration_bounds = array<i64: 4>, scalar_prefetch = 0 : i64, scratch_operands = 0 : i64, tpu.core_type = #tpu.core_type<tc>, window_params = [{transform_indices = @transform_0, window_bounds = array<i64: 128, 128>}, {pipeline_mode = #tpu.pipeline_mode<synchronous>, transform_indices = @transform_1, window_bounds = array<i64: 128, 512>}, {pipeline_mode = #tpu.pipeline_mode<synchronous>, transform_indices = @transform_2, window_bounds = array<i64: 1, 512>}, {pipeline_mode = #tpu.pipeline_mode<synchronous>, transform_indices = @transform_3, window_bounds = array<i64: 512, 128>}, {pipeline_mode = #tpu.pipeline_mode<synchronous>, transform_indices = @transform_4, window_bounds = array<i64: 1, 128>}, {transform_indices = @transform_5, window_bounds = array<i64: 128, 128>}]} {
    %c0 = arith.constant 0 : index
    %c0_0 = arith.constant 0 : index
    %0 = vector.load %arg2[%c0, %c0_0] : memref<128x512xbf16, #tpu.memory_space<vmem>>, vector<128x512xbf16>
    %c0_1 = arith.constant 0 : index
    %c0_2 = arith.constant 0 : index
    %1 = vector.load %arg4[%c0_1, %c0_2] : memref<512x128xbf16, #tpu.memory_space<vmem>>, vector<512x128xbf16>
    %c0_3 = arith.constant 0 : index
    %c0_4 = arith.constant 0 : index
    %2 = vector.load %arg1[%c0_3, %c0_4] : memref<128x128xf32, #tpu.memory_space<vmem>>, vector<128x128xf32>
    %3 = arith.truncf %2 : vector<128x128xf32> to vector<128x128xbf16>
    %cst = arith.constant dense<0.000000e+00> : vector<128x512xf32>
    %4 = tpu.matmul %3, %0, %cst {dimension_numbers = #tpu.dot_dimension_numbers<[1], [0], [0], [1], [0, 0, 1, 1], [], []>} : vector<128x128xbf16>, vector<128x512xbf16>, vector<128x512xf32> -> vector<128x512xf32>
    %c0_5 = arith.constant 0 : index
    %c0_6 = arith.constant 0 : index
    %5 = vector.load %arg3[%c0_5, %c0_6] : memref<1x512xf32, #tpu.memory_space<vmem>>, vector<1x512xf32>
    %6 = vector.broadcast %5 : vector<1x512xf32> to vector<128x512xf32>
    %7 = arith.addf %4, %6 : vector<128x512xf32>
    %cst_7 = arith.constant 0.000000e+00 : f32
    %8 = vector.broadcast %cst_7 : f32 to vector<128x512xf32>
    %9 = arith.maximumf %7, %8 : vector<128x512xf32>
    %10 = arith.truncf %9 : vector<128x512xf32> to vector<128x512xbf16>
    %cst_8 = arith.constant dense<0.000000e+00> : vector<128x128xf32>
    %11 = tpu.matmul %10, %1, %cst_8 {dimension_numbers = #tpu.dot_dimension_numbers<[1], [0], [0], [1], [0, 0, 1, 1], [], []>} : vector<128x512xbf16>, vector<512x128xbf16>, vector<128x128xf32> -> vector<128x128xf32>
    %c0_9 = arith.constant 0 : index
    %c0_10 = arith.constant 0 : index
    %12 = vector.load %arg5[%c0_9, %c0_10] : memref<1x128xf32, #tpu.memory_space<vmem>>, vector<1x128xf32>
    %13 = vector.broadcast %12 : vector<1x128xf32> to vector<128x128xf32>
    %14 = arith.addf %11, %13 : vector<128x128xf32>
    %c0_11 = arith.constant 0 : index
    %c0_12 = arith.constant 0 : index
    %15 = vector.load %arg6[%c0_11, %c0_12] : memref<128x128xf32, #tpu.memory_space<vmem>>, vector<128x128xf32>
    tpu.vector_store %arg6[%c0_11, %c0_12], %14 {strides = array<i32>} : memref<128x128xf32, #tpu.memory_space<vmem>>, vector<128x128xf32>,
    return
  }
  func.func @transform_0(%arg0: i32) -> (i32, i32) {
    %c0_i32 = arith.constant 0 : i32
    %c0_i32_0 = arith.constant 0 : i32
    return %arg0, %c0_i32 : i32, i32
  }
  func.func @transform_1(%arg0: i32) -> (i32, i32) {
    %c0_i32 = arith.constant 0 : i32
    %c0_i32_0 = arith.constant 0 : i32
    %c0_i32_1 = arith.constant 0 : i32
    return %c0_i32, %c0_i32_0 : i32, i32
  }
  func.func @transform_2(%arg0: i32) -> (i32, i32) {
    %c0_i32 = arith.constant 0 : i32
    %c0_i32_0 = arith.constant 0 : i32
    %c0_i32_1 = arith.constant 0 : i32
    return %c0_i32, %c0_i32_0 : i32, i32
  }
  func.func @transform_3(%arg0: i32) -> (i32, i32) {
    %c0_i32 = arith.constant 0 : i32
    %c0_i32_0 = arith.constant 0 : i32
    %c0_i32_1 = arith.constant 0 : i32
    return %c0_i32, %c0_i32_0 : i32, i32
  }
  func.func @transform_4(%arg0: i32) -> (i32, i32) {
    %c0_i32 = arith.constant 0 : i32
    %c0_i32_0 = arith.constant 0 : i32
    %c0_i32_1 = arith.constant 0 : i32
    return %c0_i32, %c0_i32_0 : i32, i32
  }
  func.func @transform_5(%arg0: i32) -> (i32, i32) {
    %c0_i32 = arith.constant 0 : i32
    %c0_i32_0 = arith.constant 0 : i32
    return %arg0, %c0_i32 : i32, i32
  }
}

module attributes {stable_mosaic.version = 11 : i64} {
  func.func @_mlp_kernel(%arg0: i32, %arg1: memref<128x128xf32, #tpu.memory_space<vmem>>, %arg2: memref<128x512xbf16, #tpu.memory_space<vmem>>, %arg3: memref<1x512xf32, #tpu.memory_space<vmem>>, %arg4: memref<512x128xbf16, #tpu.memory_space<vmem>>, %arg5: memref<1x128xf32, #tpu.memory_space<vmem>>, %arg6: memref<128x128xf32, #tpu.memory_space<vmem>>) attributes {dimension_semantics = [#tpu.dimension_semantics<parallel>], iteration_bounds = array<i64: 4>, scalar_prefetch = 0 : i64, scratch_operands = 0 : i64, tpu.core_type = #tpu.core_type<tc>, window_params = [{transform_indices = @transform_0, window_bounds = array<i64: 128, 128>}, {pipeline_mode = #tpu.pipeline_mode<synchronous>, transform_indices = @transform_1, window_bounds = array<i64: 128, 512>}, {pipeline_mode = #tpu.pipeline_mode<synchronous>, transform_indices = @transform_2, window_bounds = array<i64: 1, 512>}, {pipeline_mode = #tpu.pipeline_mode<synchronous>, transform_indices = @transform_3, window_bounds = array<i64: 512, 128>}, {pipeline_mode = #tpu.pipeline_mode<synchronous>, transform_indices = @transform_4, window_bounds = array<i64: 1, 128>}, {transform_indices = @transform_5, window_bounds = array<i64: 128, 128>}]} {
    %c0 = arith.constant 0 : index
    %c0_0 = arith.constant 0 : index
    %0 = vector.load %arg2[%c0, %c0_0] : memref<128x512xbf16, #tpu.memory_space<vmem>>, vector<128x512xbf16>
    %c0_1 = arith.constant 0 : index
    %c0_2 = arith.constant 0 : index
    %1 = vector.load %arg4[%c0_1, %c0_2] : memref<512x128xbf16, #tpu.memory_space<vmem>>, vector<512x128xbf16>
    %c0_3 = arith.constant 0 : index
    %c0_4 = arith.constant 0 : index
    %2 = vector.load %arg1[%c0_3, %c0_4] : memref<128x128xf32, #tpu.memory_space<vmem>>, vector<128x128xf32>
    %3 = arith.truncf %2 : vector<128x128xf32> to vector<128x128xbf16>
    %cst = arith.constant dense<0.000000e+00> : vector<128x512xf32>
    %4 = tpu.matmul %3, %0, %cst {dimension_numbers = #tpu.dot_dimension_numbers<[1], [0], [0], [1], [0, 0, 1, 1], [], []>} : vector<128x128xbf16>, vector<128x512xbf16>, vector<128x512xf32> -> vector<128x512xf32>
    %c0_5 = arith.constant 0 : index
    %c0_6 = arith.constant 0 : index
    %5 = vector.load %arg3[%c0_5, %c0_6] : memref<1x512xf32, #tpu.memory_space<vmem>>, vector<1x512xf32>
    %6 = vector.broadcast %5 : vector<1x512xf32> to vector<128x512xf32>
    %7 = arith.addf %4, %6 : vector<128x512xf32>
    %cst_7 = arith.constant 0.000000e+00 : f32
    %8 = vector.broadcast %cst_7 : f32 to vector<128x512xf32>
    %9 = arith.maximumf %7, %8 : vector<128x512xf32>
    %10 = arith.truncf %9 : vector<128x512xf32> to vector<128x512xbf16>
    %cst_8 = arith.constant dense<0.000000e+00> : vector<128x128xf32>
    %11 = tpu.matmul %10, %1, %cst_8 {dimension_numbers = #tpu.dot_dimension_numbers<[1], [0], [0], [1], [0, 0, 1, 1], [], []>} : vector<128x512xbf16>, vector<512x128xbf16>, vector<128x128xf32> -> vector<128x128xf32>
    %c0_9 = arith.constant 0 : index
    %c0_10 = arith.constant 0 : index
    %12 = vector.load %arg5[%c0_9, %c0_10] : memref<1x128xf32, #tpu.memory_space<vmem>>, vector<1x128xf32>
    %13 = vector.broadcast %12 : vector<1x128xf32> to vector<128x128xf32>
    %14 = arith.addf %11, %13 : vector<128x128xf32>
    %c0_11 = arith.constant 0 : index
    %c0_12 = arith.constant 0 : index
    %15 = vector.load %arg6[%c0_11, %c0_12] : memref<128x128xf32, #tpu.memory_space<vmem>>, vector<128x128xf32>
    tpu.vector_store %arg6[%c0_11, %c0_12], %14 {strides = array<i32>} : memref<128x128xf32, #tpu.memory_space<vmem>>, vector<128x128xf32>,
    return
  }
  func.func @transform_0(%arg0: i32) -> (i32, i32) {
    %c0_i32 = arith.constant 0 : i32
    %c0_i32_0 = arith.constant 0 : i32
    return %arg0, %c0_i32 : i32, i32
  }
  func.func @transform_1(%arg0: i32) -> (i32, i32) {
    %c0_i32 = arith.constant 0 : i32
    %c0_i32_0 = arith.constant 0 : i32
    %c0_i32_1 = arith.constant 0 : i32
    return %c0_i32, %c0_i32_0 : i32, i32
  }
  func.func @transform_2(%arg0: i32) -> (i32, i32) {
    %c0_i32 = arith.constant 0 : i32
    %c0_i32_0 = arith.constant 0 : i32
    %c0_i32_1 = arith.constant 0 : i32
    return %c0_i32, %c0_i32_0 : i32, i32
  }
  func.func @transform_3(%arg0: i32) -> (i32, i32) {
    %c0_i32 = arith.constant 0 : i32
    %c0_i32_0 = arith.constant 0 : i32
    %c0_i32_1 = arith.constant 0 : i32
    return %c0_i32, %c0_i32_0 : i32, i32
  }
  func.func @transform_4(%arg0: i32) -> (i32, i32) {
    %c0_i32 = arith.constant 0 : i32
    %c0_i32_0 = arith.constant 0 : i32
    %c0_i32_1 = arith.constant 0 : i32
    return %c0_i32, %c0_i32_0 : i32, i32
  }
  func.func @transform_5(%arg0: i32) -> (i32, i32) {
    %c0_i32 = arith.constant 0 : i32
    %c0_i32_0 = arith.constant 0 : i32
    return %arg0, %c0_i32 : i32, i32
  }
}

</mosaic_0001>

<llo_original>
// kernel: linear_block_forward.1
$region0: #{linear_block_forward.1}
  #allocation0 [shape = 'u32[]', space=smem, size = 0x4, offset = 0x4, fixed_abs, tag = 'smem constant byte address 0x4 - core index']
  #allocation1 [shape = 'u32[144,128]{1,0:T(1,128)}', space=vmem, size = 0x12000, scoped, tag = 'internal scratch']
  %s0 = inlined_call_operand.vmem [shape: f32[512,128], index: 0, kind: input, shape index: {}]
  %s1 = inlined_call_operand.vmem [shape: bf16[128,512], index: 1, kind: input, shape index: {}]
  %s2 = inlined_call_operand.vmem [shape: f32[1,512], index: 2, kind: input, shape index: {}]
  %s3 = inlined_call_operand.vmem [shape: bf16[512,128], index: 3, kind: input, shape index: {}]
  %s4 = inlined_call_operand.vmem [shape: f32[1,128], index: 4, kind: input, shape index: {}]
  %s5 = inlined_call_operand.vmem [shape: f32[512,128], index: 5, kind: output, shape index: {}]
  %s6 = sld [smem:[#allocation0]]
  $region53: #{linear_block_forward.1} parent=0
    _
  %s8 = ssub.s32 1, %s6
  %s9 = scalar_select 0, %s8, %s6
  loop: start=0, step=1, limit=6
  $region2: #{linear_block_forward.1} parent=0 // loop_pre_header
    _
  $region3: #{linear_block_forward.1} parent=0 // loop_header
    %s11 = sphi 0, %s15
    %p12 = scmp.ge.s32.totalorder %s11, 6
    %s21 = sphi 0, %s23
    %s24 = sphi 0, %s21
    %s25 = sphi 0, %s24
    %s41 = sphi 0, %s25
    %s45 = sphi 0, %s45
    %s47 = sphi 0, %s45
    %s48 = sphi 0, %s47
    %s62 = sphi 0, %s48
    %s66 = sphi 0, %s66
    %s68 = sphi 0, %s66
    %s69 = sphi 0, %s68
    %s83 = sphi 0, %s69
    %s87 = sphi 0, %s87
    %s89 = sphi 0, %s87
    %s90 = sphi 0, %s89
    %s104 = sphi 0, %s90
    %s108 = sphi 0, %s108
    %s110 = sphi 0, %s108
    %s111 = sphi 0, %s110
    %s125 = sphi 0, %s111
    %s131 = sphi 0, %s133
    %s134 = sphi 0, %s131
    %s135 = sphi 0, %s134
    %s151 = sphi 0, %s135
  $region4: #{linear_block_forward.1} parent=0 // loop_header_branch
    %14 = sbr.rel (%p12) target = $region8
  $region5: #{linear_block_forward.1} parent=0 // loop_body
    %s16 = ssub.s32 %s11, 1
    %s17 = ssub.s32 %s11, 2
    %s18 = sadd.s32 %s11, 1
    %s19 = ssub.s32 %s11, %s18
    %p20 = scmp.eq.s32.totalorder %s19, 0
    %s22 = sadd.s32 %s21, 1
    %s23 = scalar_select %p20, %s21, %s22
    %p26 = pneg %p20
    %p27 = scmp.eq.s32.totalorder %s11, 3
    %p28 = por %p26, %p27
    %p29 = scmp.ne.s32.totalorder %s21, %s24
    %p30 = scmp.eq.s32.totalorder %s11, 0
    %p31 = por %p29, %p30
    %p32 = scmp.ne.s32.totalorder %s21, %s24
    %p33 = scmp.eq.s32.totalorder %s16, 3
    %p34 = por %p32, %p33
    %p35 = scmp.ne.s32.totalorder %s24, %s25
    %p36 = scmp.eq.s32.totalorder %s16, 0
    %p37 = por %p35, %p36
    %p38 = scmp.ne.s32.totalorder %s24, %s25
    %p39 = scmp.eq.s32.totalorder %s17, 3
    %p40 = por %p38, %p39
    %p42 = scmp.ne.s32.totalorder %s25, %s41
    %p43 = scmp.eq.s32.totalorder %s17, 0
    %p44 = por %p42, %p43
    %s46 = sadd.s32 %s45, 1
    %p49 = scmp.eq.s32.totalorder %s11, 3
    %p50 = scmp.ne.s32.totalorder %s45, %s47
    %p51 = scmp.eq.s32.totalorder %s11, 0
    %p52 = por %p50, %p51
    %p53 = scmp.ne.s32.totalorder %s45, %s47
    %p54 = scmp.eq.s32.totalorder %s16, 3
    %p55 = por %p53, %p54
    %p56 = scmp.ne.s32.totalorder %s47, %s48
    %p57 = scmp.eq.s32.totalorder %s16, 0
    %p58 = por %p56, %p57
    %p59 = scmp.ne.s32.totalorder %s47, %s48
    %p60 = scmp.eq.s32.totalorder %s17, 3
    %p61 = por %p59, %p60
    %p63 = scmp.ne.s32.totalorder %s48, %s62
    %p64 = scmp.eq.s32.totalorder %s17, 0
    %p65 = por %p63, %p64
    %s67 = sadd.s32 %s66, 1
    %p70 = scmp.eq.s32.totalorder %s11, 3
    %p71 = scmp.ne.s32.totalorder %s66, %s68
    %p72 = scmp.eq.s32.totalorder %s11, 0
    %p73 = por %p71, %p72
    %p74 = scmp.ne.s32.totalorder %s66, %s68
    %p75 = scmp.eq.s32.totalorder %s16, 3
    %p76 = por %p74, %p75
    %p77 = scmp.ne.s32.totalorder %s68, %s69
    %p78 = scmp.eq.s32.totalorder %s16, 0
    %p79 = por %p77, %p78
    %p80 = scmp.ne.s32.totalorder %s68, %s69
    %p81 = scmp.eq.s32.totalorder %s17, 3
    %p82 = por %p80, %p81
    %p84 = scmp.ne.s32.totalorder %s69, %s83
    %p85 = scmp.eq.s32.totalorder %s17, 0
    %p86 = por %p84, %p85
    %s88 = sadd.s32 %s87, 1
    %p91 = scmp.eq.s32.totalorder %s11, 3
    %p92 = scmp.ne.s32.totalorder %s87, %s89
    %p93 = scmp.eq.s32.totalorder %s11, 0
    %p94 = por %p92, %p93
    %p95 = scmp.ne.s32.totalorder %s87, %s89
    %p96 = scmp.eq.s32.totalorder %s16, 3
    %p97 = por %p95, %p96
    %p98 = scmp.ne.s32.totalorder %s89, %s90
    %p99 = scmp.eq.s32.totalorder %s16, 0
    %p100 = por %p98, %p99
    %p101 = scmp.ne.s32.totalorder %s89, %s90
    %p102 = scmp.eq.s32.totalorder %s17, 3
    %p103 = por %p101, %p102
    %p105 = scmp.ne.s32.totalorder %s90, %s104
    %p106 = scmp.eq.s32.totalorder %s17, 0
    %p107 = por %p105, %p106
    %s109 = sadd.s32 %s108, 1
    %p112 = scmp.eq.s32.totalorder %s11, 3
    %p113 = scmp.ne.s32.totalorder %s108, %s110
    %p114 = scmp.eq.s32.totalorder %s11, 0
    %p115 = por %p113, %p114
    %p116 = scmp.ne.s32.totalorder %s108, %s110
    %p117 = scmp.eq.s32.totalorder %s16, 3
    %p118 = por %p116, %p117
    %p119 = scmp.ne.s32.totalorder %s110, %s111
    %p120 = scmp.eq.s32.totalorder %s16, 0
    %p121 = por %p119, %p120
    %p122 = scmp.ne.s32.totalorder %s110, %s111
    %p123 = scmp.eq.s32.totalorder %s17, 3
    %p124 = por %p122, %p123
    %p126 = scmp.ne.s32.totalorder %s111, %s125
    %p127 = scmp.eq.s32.totalorder %s17, 0
    %p128 = por %p126, %p127
    %s129 = ssub.s32 %s11, %s18
    %p130 = scmp.eq.s32.totalorder %s129, 0
    %s132 = sadd.s32 %s131, 1
    %s133 = scalar_select %p130, %s131, %s132
    %p136 = pneg %p130
    %p137 = scmp.eq.s32.totalorder %s11, 3
    %p138 = por %p136, %p137
    %p139 = scmp.ne.s32.totalorder %s131, %s134
    %p140 = scmp.eq.s32.totalorder %s11, 0
    %p141 = por %p139, %p140
    %p142 = scmp.ne.s32.totalorder %s131, %s134
    %p143 = scmp.eq.s32.totalorder %s16, 3
    %p144 = por %p142, %p143
    %p145 = scmp.ne.s32.totalorder %s134, %s135
    %p146 = scmp.eq.s32.totalorder %s16, 0
    %p147 = por %p145, %p146
    %p148 = scmp.ne.s32.totalorder %s134, %s135
    %p149 = scmp.eq.s32.totalorder %s17, 3
    %p150 = por %p148, %p149
    %p152 = scmp.ne.s32.totalorder %s135, %s151
    %p153 = scmp.eq.s32.totalorder %s17, 0
    %p154 = por %p152, %p153
    %p155 = scmp.le.s32.totalorder 1, %s11
    %p156 = scmp.lt.s32.totalorder %s11, 5
    %p157 = pnand %p155, %p156
    %p158 = pneg %p157
    // Predicated region
    $region9: #{linear_block_forward.1} parent=5 // pred_check
      _
    $region10: #{linear_block_forward.1} parent=5 // pred_check_branch
      %160 = sbr.rel (%p157) target = $region12
    $region11: #{linear_block_forward.1} parent=5 // pred_region
      %s161 = ssub.s32 %s11, 1
      // Predicated region
      $region13: #{linear_block_forward.1} parent=11 // pred_check
        %p162 = pneg %p58
      $region14: #{linear_block_forward.1} parent=11 // pred_check_branch
        %164 = sbr.rel (%p162) target = $region16
      $region15: #{linear_block_forward.1} parent=11 // pred_region
        _
      $region16: #{linear_block_forward.1} parent=11 // pred_fallthru
        _
      // Predicated region
      $region17: #{linear_block_forward.1} parent=11 // pred_check
        %p165 = pneg %p79
      $region18: #{linear_block_forward.1} parent=11 // pred_check_branch
        %167 = sbr.rel (%p165) target = $region20
      $region19: #{linear_block_forward.1} parent=11 // pred_region
        _
      $region20: #{linear_block_forward.1} parent=11 // pred_fallthru
        _
      // Predicated region
      $region21: #{linear_block_forward.1} parent=11 // pred_check
        %p168 = pneg %p100
      $region22: #{linear_block_forward.1} parent=11 // pred_check_branch
        %170 = sbr.rel (%p168) target = $region24
      $region23: #{linear_block_forward.1} parent=11 // pred_region
        _
      $region24: #{linear_block_forward.1} parent=11 // pred_fallthru
        _
      // Predicated region
      $region25: #{linear_block_forward.1} parent=11 // pred_check
        %p171 = pneg %p121
      $region26: #{linear_block_forward.1} parent=11 // pred_check_branch
        %173 = sbr.rel (%p171) target = $region28
      $region27: #{linear_block_forward.1} parent=11 // pred_region
        _
      $region28: #{linear_block_forward.1} parent=11 // pred_fallthru
        _
    $region12: #{linear_block_forward.1} parent=5 // pred_fallthru
      _
    %p174 = scmp.lt.s32.totalorder %s11, 4
    // Predicated region
    $region29: #{linear_block_forward.1} parent=5 // pred_check
      %p175 = pneg %p174
    $region30: #{linear_block_forward.1} parent=5 // pred_check_branch
      %177 = sbr.rel (%p175) target = $region32
    $region31: #{linear_block_forward.1} parent=5 // pred_region
      // Predicated region
      $region33: #{linear_block_forward.1} parent=31 // pred_check
        %p178 = pneg %p31
      $region34: #{linear_block_forward.1} parent=31 // pred_check_branch
        %180 = sbr.rel (%p178) target = $region36
      $region35: #{linear_block_forward.1} parent=31 // pred_region
        %s181 = smul.u32 16, %s11
        %p182 = scmp.lt.s32.totalorder %s181, 63
        %s183 = scalar_select %p182, %s181, 63
        %s184 = smul.addr %s183, 8
        %s185 = scalar_lea.vmem %s0, %s184
        %s186 = smul.u32 16, %s11
      $region36: #{linear_block_forward.1} parent=31 // pred_fallthru
        _
    $region32: #{linear_block_forward.1} parent=5 // pred_fallthru
      _
    %p187 = scmp.le.s32.totalorder 1, %s11
    %p188 = scmp.lt.s32.totalorder %s11, 5
    %p189 = pnand %p187, %p188
    %p190 = pneg %p189
    // Predicated region
    $region37: #{linear_block_forward.1} parent=5 // pred_check
      _
    $region38: #{linear_block_forward.1} parent=5 // pred_check_branch
      %192 = sbr.rel (%p189) target = $region40
    $region39: #{linear_block_forward.1} parent=5 // pred_region
      %s193 = ssub.s32 %s11, 1
      %s194 = smul.u32 16, %s16
      %p195 = scmp.lt.s32.totalorder %s194, 63
      %s196 = scalar_select %p195, %s194, 63
      %s197 = smul.addr %s196, 8
      %s198 = scalar_lea.vmem %s0, %s197
      %p199 = pneg %p37
      %p200 = pneg %p34
      %p201 = pneg %p58
      %p202 = pneg %p55
      %p203 = pneg %p79
      %p204 = pneg %p76
      %p205 = pneg %p100
      %p206 = pneg %p97
      %p207 = pneg %p121
      %p208 = pneg %p118
      %p209 = pneg %p147
      %p210 = pneg %p144
      %s211 = smul.u32 16, %s16
      %p212 = scmp.lt.s32.totalorder %s211, 63
      %s213 = scalar_select %p212, %s211, 63
      %s214 = smul.addr %s213, 8
      %s215 = scalar_lea.vmem %s5, %s214
      %s216 = smul.u32 16, %s16
      %p217 = scmp.lt.s32.totalorder %s216, 63
      %s218 = scalar_select %p217, %s216, 63
      %s219 = smul.addr %s218, 8
      %s220 = scalar_lea.vmem %s0, %s219
      %s221 = smul.u32 16, %s16
      %s222 = smul.u32 16, %s16
      %p223 = scmp.lt.s32.totalorder %s222, 63
      %s224 = scalar_select %p223, %s222, 63
      %s225 = smul.addr %s224, 8
      %s226 = scalar_lea.vmem %s5, %s225
      %s227 = smul.u32 16, %s16
      %v229 = vld [vmem:[%s1] sm:$0xff]
      %v230 = vld [vmem:[%s1 + $0x8] sm:$0xff]
      %v231 = vld [vmem:[%s1 + $0x10] sm:$0xff]
      %v232 = vld [vmem:[%s1 + $0x18] sm:$0xff]
      %v233 = vld [vmem:[%s1 + $0x20] sm:$0xff]
      %v234 = vld [vmem:[%s1 + $0x28] sm:$0xff]
      %v235 = vld [vmem:[%s1 + $0x30] sm:$0xff]
      %v236 = vld [vmem:[%s1 + $0x38] sm:$0xff]
      %v237 = vld [vmem:[%s1 + $0x40] sm:$0xff]
      %v238 = vld [vmem:[%s1 + $0x48] sm:$0xff]
      %v239 = vld [vmem:[%s1 + $0x50] sm:$0xff]
      %v240 = vld [vmem:[%s1 + $0x58] sm:$0xff]
      %v241 = vld [vmem:[%s1 + $0x60] sm:$0xff]
      %v242 = vld [vmem:[%s1 + $0x68] sm:$0xff]
      %v243 = vld [vmem:[%s1 + $0x70] sm:$0xff]
      %v244 = vld [vmem:[%s1 + $0x78] sm:$0xff]
      %v245 = vld [vmem:[%s1 + $0x80] sm:$0xff]
      %v246 = vld [vmem:[%s1 + $0x88] sm:$0xff]
      %v247 = vld [vmem:[%s1 + $0x90] sm:$0xff]
      %v248 = vld [vmem:[%s1 + $0x98] sm:$0xff]
      %v249 = vld [vmem:[%s1 + $0xa0] sm:$0xff]
      %v250 = vld [vmem:[%s1 + $0xa8] sm:$0xff]
      %v251 = vld [vmem:[%s1 + $0xb0] sm:$0xff]
      %v252 = vld [vmem:[%s1 + $0xb8] sm:$0xff]
      %v253 = vld [vmem:[%s1 + $0xc0] sm:$0xff]
      %v254 = vld [vmem:[%s1 + $0xc8] sm:$0xff]
      %v255 = vld [vmem:[%s1 + $0xd0] sm:$0xff]
      %v256 = vld [vmem:[%s1 + $0xd8] sm:$0xff]
      %v257 = vld [vmem:[%s1 + $0xe0] sm:$0xff]
      %v258 = vld [vmem:[%s1 + $0xe8] sm:$0xff]
      %v259 = vld [vmem:[%s1 + $0xf0] sm:$0xff]
      %v260 = vld [vmem:[%s1 + $0xf8] sm:$0xff]
      %v261 = vld [vmem:[%s3] sm:$0xf]
      %v262 = vld [vmem:[%s3 + $0x4] sm:$0xf]
      %v263 = vld [vmem:[%s3 + $0x8] sm:$0xf]
      %v264 = vld [vmem:[%s3 + $0xc] sm:$0xf]
      %v265 = vld [vmem:[%s3 + $0x10] sm:$0xf]
      %v266 = vld [vmem:[%s3 + $0x14] sm:$0xf]
      %v267 = vld [vmem:[%s3 + $0x18] sm:$0xf]
      %v268 = vld [vmem:[%s3 + $0x1c] sm:$0xf]
      %v269 = vld [vmem:[%s3 + $0x20] sm:$0xf]
      %v270 = vld [vmem:[%s3 + $0x24] sm:$0xf]
      %v271 = vld [vmem:[%s3 + $0x28] sm:$0xf]
      %v272 = vld [vmem:[%s3 + $0x2c] sm:$0xf]
      %v273 = vld [vmem:[%s3 + $0x30] sm:$0xf]
      %v274 = vld [vmem:[%s3 + $0x34] sm:$0xf]
      %v275 = vld [vmem:[%s3 + $0x38] sm:$0xf]
      %v276 = vld [vmem:[%s3 + $0x3c] sm:$0xf]
      %v277 = vld [vmem:[%s3 + $0x40] sm:$0xf]
      %v278 = vld [vmem:[%s3 + $0x44] sm:$0xf]
      %v279 = vld [vmem:[%s3 + $0x48] sm:$0xf]
      %v280 = vld [vmem:[%s3 + $0x4c] sm:$0xf]
      %v281 = vld [vmem:[%s3 + $0x50] sm:$0xf]
      %v282 = vld [vmem:[%s3 + $0x54] sm:$0xf]
      %v283 = vld [vmem:[%s3 + $0x58] sm:$0xf]
      %v284 = vld [vmem:[%s3 + $0x5c] sm:$0xf]
      %v285 = vld [vmem:[%s3 + $0x60] sm:$0xf]
      %v286 = vld [vmem:[%s3 + $0x64] sm:$0xf]
      %v287 = vld [vmem:[%s3 + $0x68] sm:$0xf]
      %v288 = vld [vmem:[%s3 + $0x6c] sm:$0xf]
      %v289 = vld [vmem:[%s3 + $0x70] sm:$0xf]
      %v290 = vld [vmem:[%s3 + $0x74] sm:$0xf]
      %v291 = vld [vmem:[%s3 + $0x78] sm:$0xf]
      %v292 = vld [vmem:[%s3 + $0x7c] sm:$0xf]
      %v293 = vld [vmem:[%s3 + $0x80] sm:$0xf]
      %v294 = vld [vmem:[%s3 + $0x84] sm:$0xf]
      %v295 = vld [vmem:[%s3 + $0x88] sm:$0xf]
      %v296 = vld [vmem:[%s3 + $0x8c] sm:$0xf]
      %v297 = vld [vmem:[%s3 + $0x90] sm:$0xf]
      %v298 = vld [vmem:[%s3 + $0x94] sm:$0xf]
      %v299 = vld [vmem:[%s3 + $0x98] sm:$0xf]
      %v300 = vld [vmem:[%s3 + $0x9c] sm:$0xf]
      %v301 = vld [vmem:[%s3 + $0xa0] sm:$0xf]
      %v302 = vld [vmem:[%s3 + $0xa4] sm:$0xf]
      %v303 = vld [vmem:[%s3 + $0xa8] sm:$0xf]
      %v304 = vld [vmem:[%s3 + $0xac] sm:$0xf]
      %v305 = vld [vmem:[%s3 + $0xb0] sm:$0xf]
      %v306 = vld [vmem:[%s3 + $0xb4] sm:$0xf]
      %v307 = vld [vmem:[%s3 + $0xb8] sm:$0xf]
      %v308 = vld [vmem:[%s3 + $0xbc] sm:$0xf]
      %v309 = vld [vmem:[%s3 + $0xc0] sm:$0xf]
      %v310 = vld [vmem:[%s3 + $0xc4] sm:$0xf]
      %v311 = vld [vmem:[%s3 + $0xc8] sm:$0xf]
      %v312 = vld [vmem:[%s3 + $0xcc] sm:$0xf]
      %v313 = vld [vmem:[%s3 + $0xd0] sm:$0xf]
      %v314 = vld [vmem:[%s3 + $0xd4] sm:$0xf]
      %v315 = vld [vmem:[%s3 + $0xd8] sm:$0xf]
      %v316 = vld [vmem:[%s3 + $0xdc] sm:$0xf]
      %v317 = vld [vmem:[%s3 + $0xe0] sm:$0xf]
      %v318 = vld [vmem:[%s3 + $0xe4] sm:$0xf]
      %v319 = vld [vmem:[%s3 + $0xe8] sm:$0xf]
      %v320 = vld [vmem:[%s3 + $0xec] sm:$0xf]
      %v321 = vld [vmem:[%s3 + $0xf0] sm:$0xf]
      %v322 = vld [vmem:[%s3 + $0xf4] sm:$0xf]
      %v323 = vld [vmem:[%s3 + $0xf8] sm:$0xf]
      %v324 = vld [vmem:[%s3 + $0xfc] sm:$0xf]
      %v325 = vld [vmem:[%s220] sm:$0xff]
      %v326 = vld [vmem:[%s220 + $0x8] sm:$0xff]
      %v327 = vld [vmem:[%s220 + $0x10] sm:$0xff]
      %v328 = vld [vmem:[%s220 + $0x18] sm:$0xff]
      %v329 = vld [vmem:[%s220 + $0x20] sm:$0xff]
      %v330 = vld [vmem:[%s220 + $0x28] sm:$0xff]
      %v331 = vld [vmem:[%s220 + $0x30] sm:$0xff]
      %v332 = vld [vmem:[%s220 + $0x38] sm:$0xff]
      %v333 = vld [vmem:[%s220 + $0x40] sm:$0xff]
      %v334 = vld [vmem:[%s220 + $0x48] sm:$0xff]
      %v335 = vld [vmem:[%s220 + $0x50] sm:$0xff]
      %v336 = vld [vmem:[%s220 + $0x58] sm:$0xff]
      %v337 = vld [vmem:[%s220 + $0x60] sm:$0xff]
      %v338 = vld [vmem:[%s220 + $0x68] sm:$0xff]
      %v339 = vld [vmem:[%s220 + $0x70] sm:$0xff]
      %v340 = vld [vmem:[%s220 + $0x78] sm:$0xff]
      %v341 = vpack.c.bf16 %v326, %v325
      %v342 = vpack.c.bf16 %v328, %v327
      %v343 = vpack.c.bf16 %v330, %v329
      %v344 = vpack.c.bf16 %v332, %v331
      %v345 = vpack.c.bf16 %v334, %v333
      %v346 = vpack.c.bf16 %v336, %v335
      %v347 = vpack.c.bf16 %v338, %v337
      %v348 = vpack.c.bf16 %v340, %v339
      %v349 = vld [vmem:[%s2] sm:$0xf]
      %v351 = vlaneseq
      %v352 = vshrl.u32 %v351, 7
      %v353 = vsub.s32 0, %v352
      %v354 = vrot.slane %v349, %v353
      %v355 = vlaneseq
      %v356 = vshrl.u32 %v355, 7
      %v357 = vsub.s32 1, %v356
      %v358 = vrot.slane %v349, %v357
      %v359 = vlaneseq
      %v360 = vshrl.u32 %v359, 7
      %v361 = vsub.s32 2, %v360
      %v362 = vrot.slane %v349, %v361
      %v363 = vlaneseq
      %v364 = vshrl.u32 %v363, 7
      %v365 = vsub.s32 3, %v364
      %v366 = vrot.slane %v349, %v365
      %v403 = vunpack.c.l.b16 %v229
      %v404 = vunpack.c.h.b16 %v229
      %v405 = vunpack.c.l.b16 %v230
      %v406 = vunpack.c.h.b16 %v230
      %v407 = vunpack.c.l.b16 %v231
      %v408 = vunpack.c.h.b16 %v231
      %v409 = vunpack.c.l.b16 %v232
      %v410 = vunpack.c.h.b16 %v232
      %v411 = vunpack.c.l.b16 %v233
      %v412 = vunpack.c.h.b16 %v233
      %v413 = vunpack.c.l.b16 %v234
      %v414 = vunpack.c.h.b16 %v234
      %v415 = vunpack.c.l.b16 %v235
      %v416 = vunpack.c.h.b16 %v235
      %v417 = vunpack.c.l.b16 %v236
      %v418 = vunpack.c.h.b16 %v236
      %v419 = vunpack.c.l.b16 %v237
      %v420 = vunpack.c.h.b16 %v237
      %v421 = vunpack.c.l.b16 %v238
      %v422 = vunpack.c.h.b16 %v238
      %v423 = vunpack.c.l.b16 %v239
      %v424 = vunpack.c.h.b16 %v239
      %v425 = vunpack.c.l.b16 %v240
      %v426 = vunpack.c.h.b16 %v240
      %v427 = vunpack.c.l.b16 %v241
      %v428 = vunpack.c.h.b16 %v241
      %v429 = vunpack.c.l.b16 %v242
      %v430 = vunpack.c.h.b16 %v242
      %v431 = vunpack.c.l.b16 %v243
      %v432 = vunpack.c.h.b16 %v243
      %v433 = vunpack.c.l.b16 %v244
      %v434 = vunpack.c.h.b16 %v244
      %v435 = vunpack.c.l.b16 %v245
      %v436 = vunpack.c.h.b16 %v245
      %v437 = vunpack.c.l.b16 %v246
      %v438 = vunpack.c.h.b16 %v246
      %v439 = vunpack.c.l.b16 %v247
      %v440 = vunpack.c.h.b16 %v247
      %v441 = vunpack.c.l.b16 %v248
      %v442 = vunpack.c.h.b16 %v248
      %v443 = vunpack.c.l.b16 %v249
      %v444 = vunpack.c.h.b16 %v249
      %v445 = vunpack.c.l.b16 %v250
      %v446 = vunpack.c.h.b16 %v250
      %v447 = vunpack.c.l.b16 %v251
      %v448 = vunpack.c.h.b16 %v251
      %v449 = vunpack.c.l.b16 %v252
      %v450 = vunpack.c.h.b16 %v252
      %v451 = vunpack.c.l.b16 %v253
      %v452 = vunpack.c.h.b16 %v253
      %v453 = vunpack.c.l.b16 %v254
      %v454 = vunpack.c.h.b16 %v254
      %v455 = vunpack.c.l.b16 %v255
      %v456 = vunpack.c.h.b16 %v255
      %v457 = vunpack.c.l.b16 %v256
      %v458 = vunpack.c.h.b16 %v256
      %v459 = vunpack.c.l.b16 %v257
      %v460 = vunpack.c.h.b16 %v257
      %v461 = vunpack.c.l.b16 %v258
      %v462 = vunpack.c.h.b16 %v258
      %v463 = vunpack.c.l.b16 %v259
      %v464 = vunpack.c.h.b16 %v259
      %v465 = vunpack.c.l.b16 %v260
      %v466 = vunpack.c.h.b16 %v260
      %v467 = vpack.c.b16 %v407, %v403
      %v468 = vpack.c.b16 %v408, %v404
      %v469 = vpack.c.b16 %v409, %v405
      %v470 = vpack.c.b16 %v410, %v406
      %v471 = vpack.c.b16 %v415, %v411
      %v472 = vpack.c.b16 %v416, %v412
      %v473 = vpack.c.b16 %v417, %v413
      %v474 = vpack.c.b16 %v418, %v414
      %v475 = vpack.c.b16 %v423, %v419
      %v476 = vpack.c.b16 %v424, %v420
      %v477 = vpack.c.b16 %v425, %v421
      %v478 = vpack.c.b16 %v426, %v422
      %v479 = vpack.c.b16 %v431, %v427
      %v480 = vpack.c.b16 %v432, %v428
      %v481 = vpack.c.b16 %v433, %v429
      %v482 = vpack.c.b16 %v434, %v430
      %v483 = vpack.c.b16 %v439, %v435
      %v484 = vpack.c.b16 %v440, %v436
      %v485 = vpack.c.b16 %v441, %v437
      %v486 = vpack.c.b16 %v442, %v438
      %v487 = vpack.c.b16 %v447, %v443
      %v488 = vpack.c.b16 %v448, %v444
      %v489 = vpack.c.b16 %v449, %v445
      %v490 = vpack.c.b16 %v450, %v446
      %v491 = vpack.c.b16 %v455, %v451
      %v492 = vpack.c.b16 %v456, %v452
      %v493 = vpack.c.b16 %v457, %v453
      %v494 = vpack.c.b16 %v458, %v454
      %v495 = vpack.c.b16 %v463, %v459
      %v496 = vpack.c.b16 %v464, %v460
      %v497 = vpack.c.b16 %v465, %v461
      %v498 = vpack.c.b16 %v466, %v462
      %531 = vmatprep.subr.bf16.mxu0 %v496
      %532 = vmatpush1.bf16.msra.mxu0 %v495
      %533 = vmatprep.subr.bf16.mxu0 %v492
      %534 = vmatpush1.bf16.msra.mxu0 %v491
      %535 = vmatprep.subr.bf16.mxu0 %v488
      %536 = vmatpush1.bf16.msra.mxu0 %v487
      %537 = vmatprep.subr.bf16.mxu0 %v484
      %538 = vmatpush1.bf16.msra.mxu0 %v483
      %539 = vmatprep.subr.bf16.mxu0 %v480
      %540 = vmatpush1.bf16.msra.mxu0 %v479
      %541 = vmatprep.subr.bf16.mxu0 %v476
      %542 = vmatpush1.bf16.msra.mxu0 %v475
      %543 = vmatprep.subr.bf16.mxu0 %v472
      %544 = vmatpush1.bf16.msra.mxu0 %v471
      %545 = vmatprep.subr.bf16.mxu0 %v468
      %546 = vmatpush1.bf16.msra.mxu0 %v467
      %547 = vmatprep.subr.bf16.mxu0 0
      %548 = vmatpush2.bf16.msra.mxu0 0
      %549 = vmatprep.subr.bf16.mxu0 0
      %550 = vmatpush2.bf16.msra.mxu0 0
      %551 = vmatprep.subr.bf16.mxu0 0
      %552 = vmatpush2.bf16.msra.mxu0 0
      %553 = vmatprep.subr.bf16.mxu0 0
      %554 = vmatpush2.bf16.msra.mxu0 0
      %555 = vmatprep.subr.bf16.mxu0 0
      %556 = vmatpush2.bf16.msra.mxu0 0
      %557 = vmatprep.subr.bf16.mxu0 0
      %558 = vmatpush2.bf16.msra.mxu0 0
      %559 = vmatprep.subr.bf16.mxu0 0
      %560 = vmatpush2.bf16.msra.mxu0 0
      %561 = vmatprep.subr.bf16.mxu0 0
      %562 = vmatpush2.bf16.msra.mxu0 0
      %563 = vmatprep.mubr.bf16.mxu0 0
      %564 = vmatmul.mubr.bf16.gmra.mxu0 %v341
      %v565 = vpop.f32.mrf.mxu0
      %v566 = vadd.f32 %v354, %v565
      %v567 = vpop.f32.mrf.mxu0
      %v568 = vadd.f32 %v358, %v567
      %v569 = vpop.f32.mrf.mxu0
      %v570 = vadd.f32 %v354, %v569
      %v571 = vpop.f32.mrf.mxu0
      %v572 = vadd.f32 %v358, %v571
      %573 = vmatprep.mubr.bf16.mxu0 0
      %574 = vmatmul.mubr.bf16.gmra.mxu0 %v342
      %v575 = vpop.f32.mrf.mxu0
      %v576 = vadd.f32 %v354, %v575
      %v577 = vpop.f32.mrf.mxu0
      %v578 = vadd.f32 %v358, %v577
      %v579 = vpop.f32.mrf.mxu0
      %v580 = vadd.f32 %v354, %v579
      %v581 = vpop.f32.mrf.mxu0
      %v582 = vadd.f32 %v358, %v581
      %583 = vmatprep.mubr.bf16.mxu0 0
      %584 = vmatmul.mubr.bf16.gmra.mxu0 %v343
      %v585 = vpop.f32.mrf.mxu0
      %v586 = vadd.f32 %v354, %v585
      %v587 = vpop.f32.mrf.mxu0
      %v588 = vadd.f32 %v358, %v587
      %v589 = vpop.f32.mrf.mxu0
      %v590 = vadd.f32 %v354, %v589
      %v591 = vpop.f32.mrf.mxu0
      %v592 = vadd.f32 %v358, %v591
      %593 = vmatprep.mubr.bf16.mxu0 0
      %594 = vmatmul.mubr.bf16.gmra.mxu0 %v344
      %v595 = vpop.f32.mrf.mxu0
      %v596 = vadd.f32 %v354, %v595
      %v597 = vpop.f32.mrf.mxu0
      %v598 = vadd.f32 %v358, %v597
      %v599 = vpop.f32.mrf.mxu0
      %v600 = vadd.f32 %v354, %v599
      %v601 = vpop.f32.mrf.mxu0
      %v602 = vadd.f32 %v358, %v601
      %603 = vmatprep.mubr.bf16.mxu0 0
      %604 = vmatmul.mubr.bf16.gmra.mxu0 %v345
      %v605 = vpop.f32.mrf.mxu0
      %v606 = vadd.f32 %v354, %v605
      %v607 = vpop.f32.mrf.mxu0
      %v608 = vadd.f32 %v358, %v607
      %v609 = vpop.f32.mrf.mxu0
      %v610 = vadd.f32 %v354, %v609
      %v611 = vpop.f32.mrf.mxu0
      %v612 = vadd.f32 %v358, %v611
      %613 = vmatprep.mubr.bf16.mxu0 0
      %614 = vmatmul.mubr.bf16.gmra.mxu0 %v346
      %v615 = vpop.f32.mrf.mxu0
      %v616 = vadd.f32 %v354, %v615
      %v617 = vpop.f32.mrf.mxu0
      %v618 = vadd.f32 %v358, %v617
      %v619 = vpop.f32.mrf.mxu0
      %v620 = vadd.f32 %v354, %v619
      %v621 = vpop.f32.mrf.mxu0
      %v622 = vadd.f32 %v358, %v621
      %623 = vmatprep.mubr.bf16.mxu0 0
      %624 = vmatmul.mubr.bf16.gmra.mxu0 %v347
      %v625 = vpop.f32.mrf.mxu0
      %v626 = vadd.f32 %v354, %v625
      %v627 = vpop.f32.mrf.mxu0
      %v628 = vadd.f32 %v358, %v627
      %v629 = vpop.f32.mrf.mxu0
      %v630 = vadd.f32 %v354, %v629
      %v631 = vpop.f32.mrf.mxu0
      %v632 = vadd.f32 %v358, %v631
      %633 = vmatprep.mubr.bf16.mxu0 0
      %634 = vmatmul.mubr.bf16.gmra.mxu0 %v348
      %v635 = vpop.f32.mrf.mxu0
      %v636 = vadd.f32 %v354, %v635
      %v637 = vpop.f32.mrf.mxu0
      %v638 = vadd.f32 %v358, %v637
      %v639 = vpop.f32.mrf.mxu0
      %v640 = vadd.f32 %v354, %v639
      %v641 = vpop.f32.mrf.mxu0
      %v642 = vadd.f32 %v358, %v641
      %643 = vdwg.mxu0
      %644 = vmatprep.subr.bf16.mxu0 %v498
      %645 = vmatpush1.bf16.msra.mxu0 %v497
      %646 = vmatprep.subr.bf16.mxu0 %v494
      %647 = vmatpush1.bf16.msra.mxu0 %v493
      %648 = vmatprep.subr.bf16.mxu0 %v490
      %649 = vmatpush1.bf16.msra.mxu0 %v489
      %650 = vmatprep.subr.bf16.mxu0 %v486
      %651 = vmatpush1.bf16.msra.mxu0 %v485
      %652 = vmatprep.subr.bf16.mxu0 %v482
      %653 = vmatpush1.bf16.msra.mxu0 %v481
      %654 = vmatprep.subr.bf16.mxu0 %v478
      %655 = vmatpush1.bf16.msra.mxu0 %v477
      %656 = vmatprep.subr.bf16.mxu0 %v474
      %657 = vmatpush1.bf16.msra.mxu0 %v473
      %658 = vmatprep.subr.bf16.mxu0 %v470
      %659 = vmatpush1.bf16.msra.mxu0 %v469
      %660 = vmatprep.subr.bf16.mxu0 0
      %661 = vmatpush2.bf16.msra.mxu0 0
      %662 = vmatprep.subr.bf16.mxu0 0
      %663 = vmatpush2.bf16.msra.mxu0 0
      %664 = vmatprep.subr.bf16.mxu0 0
      %665 = vmatpush2.bf16.msra.mxu0 0
      %666 = vmatprep.subr.bf16.mxu0 0
      %667 = vmatpush2.bf16.msra.mxu0 0
      %668 = vmatprep.subr.bf16.mxu0 0
      %669 = vmatpush2.bf16.msra.mxu0 0
      %670 = vmatprep.subr.bf16.mxu0 0
      %671 = vmatpush2.bf16.msra.mxu0 0
      %672 = vmatprep.subr.bf16.mxu0 0
      %673 = vmatpush2.bf16.msra.mxu0 0
      %674 = vmatprep.subr.bf16.mxu0 0
      %675 = vmatpush2.bf16.msra.mxu0 0
      %676 = vmatprep.mubr.bf16.mxu0 0
      %677 = vmatmul.mubr.bf16.gmra.mxu0 %v341
      %v678 = vpop.f32.mrf.mxu0
      %v679 = vadd.f32 %v362, %v678
      %v680 = vpop.f32.mrf.mxu0
      %v681 = vadd.f32 %v366, %v680
      %v682 = vpop.f32.mrf.mxu0
      %v683 = vadd.f32 %v362, %v682
      %v684 = vpop.f32.mrf.mxu0
      %v685 = vadd.f32 %v366, %v684
      %686 = vmatprep.mubr.bf16.mxu0 0
      %687 = vmatmul.mubr.bf16.gmra.mxu0 %v342
      %v688 = vpop.f32.mrf.mxu0
      %v689 = vadd.f32 %v362, %v688
      %v690 = vpop.f32.mrf.mxu0
      %v691 = vadd.f32 %v366, %v690
      %v692 = vpop.f32.mrf.mxu0
      %v693 = vadd.f32 %v362, %v692
      %v694 = vpop.f32.mrf.mxu0
      %v695 = vadd.f32 %v366, %v694
      %696 = vmatprep.mubr.bf16.mxu0 0
      %697 = vmatmul.mubr.bf16.gmra.mxu0 %v343
      %v698 = vpop.f32.mrf.mxu0
      %v699 = vadd.f32 %v362, %v698
      %v700 = vpop.f32.mrf.mxu0
      %v701 = vadd.f32 %v366, %v700
      %v702 = vpop.f32.mrf.mxu0
      %v703 = vadd.f32 %v362, %v702
      %v704 = vpop.f32.mrf.mxu0
      %v705 = vadd.f32 %v366, %v704
      %706 = vmatprep.mubr.bf16.mxu0 0
      %707 = vmatmul.mubr.bf16.gmra.mxu0 %v344
      %v708 = vpop.f32.mrf.mxu0
      %v709 = vadd.f32 %v362, %v708
      %v710 = vpop.f32.mrf.mxu0
      %v711 = vadd.f32 %v366, %v710
      %v712 = vpop.f32.mrf.mxu0
      %v713 = vadd.f32 %v362, %v712
      %v714 = vpop.f32.mrf.mxu0
      %v715 = vadd.f32 %v366, %v714
      %716 = vmatprep.mubr.bf16.mxu0 0
      %717 = vmatmul.mubr.bf16.gmra.mxu0 %v345
      %v718 = vpop.f32.mrf.mxu0
      %v719 = vadd.f32 %v362, %v718
      %v720 = vpop.f32.mrf.mxu0
      %v721 = vadd.f32 %v366, %v720
      %v722 = vpop.f32.mrf.mxu0
      %v723 = vadd.f32 %v362, %v722
      %v724 = vpop.f32.mrf.mxu0
      %v725 = vadd.f32 %v366, %v724
      %726 = vmatprep.mubr.bf16.mxu0 0
      %727 = vmatmul.mubr.bf16.gmra.mxu0 %v346
      %v728 = vpop.f32.mrf.mxu0
      %v729 = vadd.f32 %v362, %v728
      %v730 = vpop.f32.mrf.mxu0
      %v731 = vadd.f32 %v366, %v730
      %v732 = vpop.f32.mrf.mxu0
      %v733 = vadd.f32 %v362, %v732
      %v734 = vpop.f32.mrf.mxu0
      %v735 = vadd.f32 %v366, %v734
      %736 = vmatprep.mubr.bf16.mxu0 0
      %737 = vmatmul.mubr.bf16.gmra.mxu0 %v347
      %v738 = vpop.f32.mrf.mxu0
      %v739 = vadd.f32 %v362, %v738
      %v740 = vpop.f32.mrf.mxu0
      %v741 = vadd.f32 %v366, %v740
      %v742 = vpop.f32.mrf.mxu0
      %v743 = vadd.f32 %v362, %v742
      %v744 = vpop.f32.mrf.mxu0
      %v745 = vadd.f32 %v366, %v744
      %746 = vmatprep.mubr.bf16.mxu0 0
      %747 = vmatmul.mubr.bf16.gmra.mxu0 %v348
      %v748 = vpop.f32.mrf.mxu0
      %v749 = vadd.f32 %v362, %v748
      %v750 = vpop.f32.mrf.mxu0
      %v751 = vadd.f32 %v366, %v750
      %v752 = vpop.f32.mrf.mxu0
      %v753 = vadd.f32 %v362, %v752
      %v754 = vpop.f32.mrf.mxu0
      %v755 = vadd.f32 %v366, %v754
      %756 = vdwg.mxu0
      %v757 = vmax.f32 %v566, 0.0
      %v758 = vmax.f32 %v568, 0.0
      %v759 = vmax.f32 %v679, 0.0
      %v760 = vmax.f32 %v681, 0.0
      %v761 = vmax.f32 %v570, 0.0
      %v762 = vmax.f32 %v572, 0.0
      %v763 = vmax.f32 %v683, 0.0
      %v764 = vmax.f32 %v685, 0.0
      %v765 = vmax.f32 %v576, 0.0
      %v766 = vmax.f32 %v578, 0.0
      %v767 = vmax.f32 %v689, 0.0
      %v768 = vmax.f32 %v691, 0.0
      %v769 = vmax.f32 %v580, 0.0
      %v770 = vmax.f32 %v582, 0.0
      %v771 = vmax.f32 %v693, 0.0
      %v772 = vmax.f32 %v695, 0.0
      %v773 = vmax.f32 %v586, 0.0
      %v774 = vmax.f32 %v588, 0.0
      %v775 = vmax.f32 %v699, 0.0
      %v776 = vmax.f32 %v701, 0.0
      %v777 = vmax.f32 %v590, 0.0
      %v778 = vmax.f32 %v592, 0.0
      %v779 = vmax.f32 %v703, 0.0
      %v780 = vmax.f32 %v705, 0.0
      %v781 = vmax.f32 %v596, 0.0
      %v782 = vmax.f32 %v598, 0.0
      %v783 = vmax.f32 %v709, 0.0
      %v784 = vmax.f32 %v711, 0.0
      %v785 = vmax.f32 %v600, 0.0
      %v786 = vmax.f32 %v602, 0.0
      %v787 = vmax.f32 %v713, 0.0
      %v788 = vmax.f32 %v715, 0.0
      %v789 = vmax.f32 %v606, 0.0
      %v790 = vmax.f32 %v608, 0.0
      %v791 = vmax.f32 %v719, 0.0
      %v792 = vmax.f32 %v721, 0.0
      %v793 = vmax.f32 %v610, 0.0
      %v794 = vmax.f32 %v612, 0.0
      %v795 = vmax.f32 %v723, 0.0
      %v796 = vmax.f32 %v725, 0.0
      %v797 = vmax.f32 %v616, 0.0
      %v798 = vmax.f32 %v618, 0.0
      %v799 = vmax.f32 %v729, 0.0
      %v800 = vmax.f32 %v731, 0.0
      %v801 = vmax.f32 %v620, 0.0
      %v802 = vmax.f32 %v622, 0.0
      %v803 = vmax.f32 %v733, 0.0
      %v804 = vmax.f32 %v735, 0.0
      %v805 = vmax.f32 %v626, 0.0
      %v806 = vmax.f32 %v628, 0.0
      %v807 = vmax.f32 %v739, 0.0
      %v808 = vmax.f32 %v741, 0.0
      %v809 = vmax.f32 %v630, 0.0
      %v810 = vmax.f32 %v632, 0.0
      %v811 = vmax.f32 %v743, 0.0
      %v812 = vmax.f32 %v745, 0.0
      %v813 = vmax.f32 %v636, 0.0
      %v814 = vmax.f32 %v638, 0.0
      %v815 = vmax.f32 %v749, 0.0
      %v816 = vmax.f32 %v751, 0.0
      %v817 = vmax.f32 %v640, 0.0
      %v818 = vmax.f32 %v642, 0.0
      %v819 = vmax.f32 %v753, 0.0
      %v820 = vmax.f32 %v755, 0.0
      %v821 = vpack.c.bf16 %v761, %v757
      %v822 = vpack.c.bf16 %v762, %v758
      %v823 = vpack.c.bf16 %v763, %v759
      %v824 = vpack.c.bf16 %v764, %v760
      %v825 = vpack.c.bf16 %v769, %v765
      %v826 = vpack.c.bf16 %v770, %v766
      %v827 = vpack.c.bf16 %v771, %v767
      %v828 = vpack.c.bf16 %v772, %v768
      %v829 = vpack.c.bf16 %v777, %v773
      %v830 = vpack.c.bf16 %v778, %v774
      %v831 = vpack.c.bf16 %v779, %v775
      %v832 = vpack.c.bf16 %v780, %v776
      %v833 = vpack.c.bf16 %v785, %v781
      %v834 = vpack.c.bf16 %v786, %v782
      %v835 = vpack.c.bf16 %v787, %v783
      %v836 = vpack.c.bf16 %v788, %v784
      %v837 = vpack.c.bf16 %v793, %v789
      %v838 = vpack.c.bf16 %v794, %v790
      %v839 = vpack.c.bf16 %v795, %v791
      %v840 = vpack.c.bf16 %v796, %v792
      %v841 = vpack.c.bf16 %v801, %v797
      %v842 = vpack.c.bf16 %v802, %v798
      %v843 = vpack.c.bf16 %v803, %v799
      %v844 = vpack.c.bf16 %v804, %v800
      %v845 = vpack.c.bf16 %v809, %v805
      %v846 = vpack.c.bf16 %v810, %v806
      %v847 = vpack.c.bf16 %v811, %v807
      %v848 = vpack.c.bf16 %v812, %v808
      %v849 = vpack.c.bf16 %v817, %v813
      %v850 = vpack.c.bf16 %v818, %v814
      %v851 = vpack.c.bf16 %v819, %v815
      %v852 = vpack.c.bf16 %v820, %v816
      %v853 = vld [vmem:[%s4] sm:$0x1]
      %v855 = vlaneseq
      %v856 = vshrl.u32 %v855, 7
      %v857 = vsub.s32 0, %v856
      %v858 = vrot.slane %v853, %v857
      %v924 = vunpack.c.l.b16 %v261
      %v925 = vunpack.c.l.b16 %v262
      %v926 = vunpack.c.l.b16 %v263
      %v927 = vunpack.c.l.b16 %v264
      %v928 = vunpack.c.l.b16 %v265
      %v929 = vunpack.c.l.b16 %v266
      %v930 = vunpack.c.l.b16 %v267
      %v931 = vunpack.c.l.b16 %v268
      %v932 = vunpack.c.l.b16 %v269
      %v933 = vunpack.c.l.b16 %v270
      %v934 = vunpack.c.l.b16 %v271
      %v935 = vunpack.c.l.b16 %v272
      %v936 = vunpack.c.l.b16 %v273
      %v937 = vunpack.c.l.b16 %v274
      %v938 = vunpack.c.l.b16 %v275
      %v939 = vunpack.c.l.b16 %v276
      %v940 = vunpack.c.l.b16 %v277
      %v941 = vunpack.c.l.b16 %v278
      %v942 = vunpack.c.l.b16 %v279
      %v943 = vunpack.c.l.b16 %v280
      %v944 = vunpack.c.l.b16 %v281
      %v945 = vunpack.c.l.b16 %v282
      %v946 = vunpack.c.l.b16 %v283
      %v947 = vunpack.c.l.b16 %v284
      %v948 = vunpack.c.l.b16 %v285
      %v949 = vunpack.c.l.b16 %v286
      %v950 = vunpack.c.l.b16 %v287
      %v951 = vunpack.c.l.b16 %v288
      %v952 = vunpack.c.l.b16 %v289
      %v953 = vunpack.c.l.b16 %v290
      %v954 = vunpack.c.l.b16 %v291
      %v955 = vunpack.c.l.b16 %v292
      %v956 = vunpack.c.l.b16 %v293
      %v957 = vunpack.c.l.b16 %v294
      %v958 = vunpack.c.l.b16 %v295
      %v959 = vunpack.c.l.b16 %v296
      %v960 = vunpack.c.l.b16 %v297
      %v961 = vunpack.c.l.b16 %v298
      %v962 = vunpack.c.l.b16 %v299
      %v963 = vunpack.c.l.b16 %v300
      %v964 = vunpack.c.l.b16 %v301
      %v965 = vunpack.c.l.b16 %v302
      %v966 = vunpack.c.l.b16 %v303
      %v967 = vunpack.c.l.b16 %v304
      %v968 = vunpack.c.l.b16 %v305
      %v969 = vunpack.c.l.b16 %v306
      %v970 = vunpack.c.l.b16 %v307
      %v971 = vunpack.c.l.b16 %v308
      %v972 = vunpack.c.l.b16 %v309
      %v973 = vunpack.c.l.b16 %v310
      %v974 = vunpack.c.l.b16 %v311
      %v975 = vunpack.c.l.b16 %v312
      %v976 = vunpack.c.l.b16 %v313
      %v977 = vunpack.c.l.b16 %v314
      %v978 = vunpack.c.l.b16 %v315
      %v979 = vunpack.c.l.b16 %v316
      %v980 = vunpack.c.l.b16 %v317
      %v981 = vunpack.c.l.b16 %v318
      %v982 = vunpack.c.l.b16 %v319
      %v983 = vunpack.c.l.b16 %v320
      %v984 = vunpack.c.l.b16 %v321
      %v985 = vunpack.c.l.b16 %v322
      %v986 = vunpack.c.l.b16 %v323
      %v987 = vunpack.c.l.b16 %v324
      %v988 = vpack.c.b16 %v925, %v924
      %v989 = vpack.c.b16 %v927, %v926
      %v990 = vpack.c.b16 %v929, %v928
      %v991 = vpack.c.b16 %v931, %v930
      %v992 = vpack.c.b16 %v933, %v932
      %v993 = vpack.c.b16 %v935, %v934
      %v994 = vpack.c.b16 %v937, %v936
      %v995 = vpack.c.b16 %v939, %v938
      %v996 = vpack.c.b16 %v941, %v940
      %v997 = vpack.c.b16 %v943, %v942
      %v998 = vpack.c.b16 %v945, %v944
      %v999 = vpack.c.b16 %v947, %v946
      %v1000 = vpack.c.b16 %v949, %v948
      %v1001 = vpack.c.b16 %v951, %v950
      %v1002 = vpack.c.b16 %v953, %v952
      %v1003 = vpack.c.b16 %v955, %v954
      %v1004 = vpack.c.b16 %v957, %v956
      %v1005 = vpack.c.b16 %v959, %v958
      %v1006 = vpack.c.b16 %v961, %v960
      %v1007 = vpack.c.b16 %v963, %v962
      %v1008 = vpack.c.b16 %v965, %v964
      %v1009 = vpack.c.b16 %v967, %v966
      %v1010 = vpack.c.b16 %v969, %v968
      %v1011 = vpack.c.b16 %v971, %v970
      %v1012 = vpack.c.b16 %v973, %v972
      %v1013 = vpack.c.b16 %v975, %v974
      %v1014 = vpack.c.b16 %v977, %v976
      %v1015 = vpack.c.b16 %v979, %v978
      %v1016 = vpack.c.b16 %v981, %v980
      %v1017 = vpack.c.b16 %v983, %v982
      %v1018 = vpack.c.b16 %v985, %v984
      %v1019 = vpack.c.b16 %v987, %v986
      %1052 = vmatprep.subr.bf16.mxu0 0
      %1053 = vmatpush1.bf16.msra.mxu0 %v995
      %1054 = vmatprep.subr.bf16.mxu0 0
      %1055 = vmatpush1.bf16.msra.mxu0 %v994
      %1056 = vmatprep.subr.bf16.mxu0 0
      %1057 = vmatpush1.bf16.msra.mxu0 %v993
      %1058 = vmatprep.subr.bf16.mxu0 0
      %1059 = vmatpush1.bf16.msra.mxu0 %v992
      %1060 = vmatprep.subr.bf16.mxu0 0
      %1061 = vmatpush1.bf16.msra.mxu0 %v991
      %1062 = vmatprep.subr.bf16.mxu0 0
      %1063 = vmatpush1.bf16.msra.mxu0 %v990
      %1064 = vmatprep.subr.bf16.mxu0 0
      %1065 = vmatpush1.bf16.msra.mxu0 %v989
      %1066 = vmatprep.subr.bf16.mxu0 0
      %1067 = vmatpush1.bf16.msra.mxu0 %v988
      %1068 = vmatprep.subr.bf16.mxu0 0
      %1069 = vmatpush2.bf16.msra.mxu0 %v1003
      %1070 = vmatprep.subr.bf16.mxu0 0
      %1071 = vmatpush2.bf16.msra.mxu0 %v1002
      %1072 = vmatprep.subr.bf16.mxu0 0
      %1073 = vmatpush2.bf16.msra.mxu0 %v1001
      %1074 = vmatprep.subr.bf16.mxu0 0
      %1075 = vmatpush2.bf16.msra.mxu0 %v1000
      %1076 = vmatprep.subr.bf16.mxu0 0
      %1077 = vmatpush2.bf16.msra.mxu0 %v999
      %1078 = vmatprep.subr.bf16.mxu0 0
      %1079 = vmatpush2.bf16.msra.mxu0 %v998
      %1080 = vmatprep.subr.bf16.mxu0 0
      %1081 = vmatpush2.bf16.msra.mxu0 %v997
      %1082 = vmatprep.subr.bf16.mxu0 0
      %1083 = vmatpush2.bf16.msra.mxu0 %v996
      %1084 = vmatprep.mubr.bf16.mxu0 %v822
      %1085 = vmatmul.mubr.bf16.gmra.mxu0 %v821
      %v1086 = vpop.f32.mrf.mxu0
      %v1087 = vadd.f32 %v858, %v1086
      %v1088 = vpop.f32.mrf.mxu0
      %v1089 = vpop.f32.mrf.mxu0
      %v1090 = vadd.f32 %v858, %v1089
      %v1091 = vpop.f32.mrf.mxu0
      %1092 = vmatprep.mubr.bf16.mxu0 %v826
      %1093 = vmatmul.mubr.bf16.gmra.mxu0 %v825
      %v1094 = vpop.f32.mrf.mxu0
      %v1095 = vadd.f32 %v858, %v1094
      %v1096 = vpop.f32.mrf.mxu0
      %v1097 = vpop.f32.mrf.mxu0
      %v1098 = vadd.f32 %v858, %v1097
      %v1099 = vpop.f32.mrf.mxu0
      %1100 = vmatprep.mubr.bf16.mxu0 %v830
      %1101 = vmatmul.mubr.bf16.gmra.mxu0 %v829
      %v1102 = vpop.f32.mrf.mxu0
      %v1103 = vadd.f32 %v858, %v1102
      %v1104 = vpop.f32.mrf.mxu0
      %v1105 = vpop.f32.mrf.mxu0
      %v1106 = vadd.f32 %v858, %v1105
      %v1107 = vpop.f32.mrf.mxu0
      %1108 = vmatprep.mubr.bf16.mxu0 %v834
      %1109 = vmatmul.mubr.bf16.gmra.mxu0 %v833
      %v1110 = vpop.f32.mrf.mxu0
      %v1111 = vadd.f32 %v858, %v1110
      %v1112 = vpop.f32.mrf.mxu0
      %v1113 = vpop.f32.mrf.mxu0
      %v1114 = vadd.f32 %v858, %v1113
      %v1115 = vpop.f32.mrf.mxu0
      %1116 = vmatprep.mubr.bf16.mxu0 %v838
      %1117 = vmatmul.mubr.bf16.gmra.mxu0 %v837
      %v1118 = vpop.f32.mrf.mxu0
      %v1119 = vadd.f32 %v858, %v1118
      %v1120 = vpop.f32.mrf.mxu0
      %v1121 = vpop.f32.mrf.mxu0
      %v1122 = vadd.f32 %v858, %v1121
      %v1123 = vpop.f32.mrf.mxu0
      %1124 = vmatprep.mubr.bf16.mxu0 %v842
      %1125 = vmatmul.mubr.bf16.gmra.mxu0 %v841
      %v1126 = vpop.f32.mrf.mxu0
      %v1127 = vadd.f32 %v858, %v1126
      %v1128 = vpop.f32.mrf.mxu0
      %v1129 = vpop.f32.mrf.mxu0
      %v1130 = vadd.f32 %v858, %v1129
      %v1131 = vpop.f32.mrf.mxu0
      %1132 = vmatprep.mubr.bf16.mxu0 %v846
      %1133 = vmatmul.mubr.bf16.gmra.mxu0 %v845
      %v1134 = vpop.f32.mrf.mxu0
      %v1135 = vadd.f32 %v858, %v1134
      %v1136 = vpop.f32.mrf.mxu0
      %v1137 = vpop.f32.mrf.mxu0
      %v1138 = vadd.f32 %v858, %v1137
      %v1139 = vpop.f32.mrf.mxu0
      %1140 = vmatprep.mubr.bf16.mxu0 %v850
      %1141 = vmatmul.mubr.bf16.gmra.mxu0 %v849
      %v1142 = vpop.f32.mrf.mxu0
      %v1143 = vadd.f32 %v858, %v1142
      %v1144 = vpop.f32.mrf.mxu0
      %v1145 = vpop.f32.mrf.mxu0
      %v1146 = vadd.f32 %v858, %v1145
      %v1147 = vpop.f32.mrf.mxu0
      %1148 = vdwg.mxu0
      %1149 = vmatprep.subr.bf16.mxu0 0
      %1150 = vmatpush1.bf16.msra.mxu0 %v1011
      %1151 = vmatprep.subr.bf16.mxu0 0
      %1152 = vmatpush1.bf16.msra.mxu0 %v1010
      %1153 = vmatprep.subr.bf16.mxu0 0
      %1154 = vmatpush1.bf16.msra.mxu0 %v1009
      %1155 = vmatprep.subr.bf16.mxu0 0
      %1156 = vmatpush1.bf16.msra.mxu0 %v1008
      %1157 = vmatprep.subr.bf16.mxu0 0
      %1158 = vmatpush1.bf16.msra.mxu0 %v1007
      %1159 = vmatprep.subr.bf16.mxu0 0
      %1160 = vmatpush1.bf16.msra.mxu0 %v1006
      %1161 = vmatprep.subr.bf16.mxu0 0
      %1162 = vmatpush1.bf16.msra.mxu0 %v1005
      %1163 = vmatprep.subr.bf16.mxu0 0
      %1164 = vmatpush1.bf16.msra.mxu0 %v1004
      %1165 = vmatprep.subr.bf16.mxu0 0
      %1166 = vmatpush2.bf16.msra.mxu0 %v1019
      %1167 = vmatprep.subr.bf16.mxu0 0
      %1168 = vmatpush2.bf16.msra.mxu0 %v1018
      %1169 = vmatprep.subr.bf16.mxu0 0
      %1170 = vmatpush2.bf16.msra.mxu0 %v1017
      %1171 = vmatprep.subr.bf16.mxu0 0
      %1172 = vmatpush2.bf16.msra.mxu0 %v1016
      %1173 = vmatprep.subr.bf16.mxu0 0
      %1174 = vmatpush2.bf16.msra.mxu0 %v1015
      %1175 = vmatprep.subr.bf16.mxu0 0
      %1176 = vmatpush2.bf16.msra.mxu0 %v1014
      %1177 = vmatprep.subr.bf16.mxu0 0
      %1178 = vmatpush2.bf16.msra.mxu0 %v1013
      %1179 = vmatprep.subr.bf16.mxu0 0
      %1180 = vmatpush2.bf16.msra.mxu0 %v1012
      %1181 = vmatprep.mubr.bf16.mxu0 %v824
      %1182 = vmatmul.mubr.bf16.gmra.mxu0 %v823
      %v1183 = vpop.f32.mrf.mxu0
      %v1184 = vadd.f32 %v1087, %v1183
      %v1185 = vpop.f32.mrf.mxu0
      %v1186 = vpop.f32.mrf.mxu0
      %v1187 = vadd.f32 %v1090, %v1186
      %v1188 = vpop.f32.mrf.mxu0
      %1189 = vmatprep.mubr.bf16.mxu0 %v828
      %1190 = vmatmul.mubr.bf16.gmra.mxu0 %v827
      %v1191 = vpop.f32.mrf.mxu0
      %v1192 = vadd.f32 %v1095, %v1191
      %v1193 = vpop.f32.mrf.mxu0
      %v1194 = vpop.f32.mrf.mxu0
      %v1195 = vadd.f32 %v1098, %v1194
      %v1196 = vpop.f32.mrf.mxu0
      %1197 = vmatprep.mubr.bf16.mxu0 %v832
      %1198 = vmatmul.mubr.bf16.gmra.mxu0 %v831
      %v1199 = vpop.f32.mrf.mxu0
      %v1200 = vadd.f32 %v1103, %v1199
      %v1201 = vpop.f32.mrf.mxu0
      %v1202 = vpop.f32.mrf.mxu0
      %v1203 = vadd.f32 %v1106, %v1202
      %v1204 = vpop.f32.mrf.mxu0
      %1205 = vmatprep.mubr.bf16.mxu0 %v836
      %1206 = vmatmul.mubr.bf16.gmra.mxu0 %v835
      %v1207 = vpop.f32.mrf.mxu0
      %v1208 = vadd.f32 %v1111, %v1207
      %v1209 = vpop.f32.mrf.mxu0
      %v1210 = vpop.f32.mrf.mxu0
      %v1211 = vadd.f32 %v1114, %v1210
      %v1212 = vpop.f32.mrf.mxu0
      %1213 = vmatprep.mubr.bf16.mxu0 %v840
      %1214 = vmatmul.mubr.bf16.gmra.mxu0 %v839
      %v1215 = vpop.f32.mrf.mxu0
      %v1216 = vadd.f32 %v1119, %v1215
      %v1217 = vpop.f32.mrf.mxu0
      %v1218 = vpop.f32.mrf.mxu0
      %v1219 = vadd.f32 %v1122, %v1218
      %v1220 = vpop.f32.mrf.mxu0
      %1221 = vmatprep.mubr.bf16.mxu0 %v844
      %1222 = vmatmul.mubr.bf16.gmra.mxu0 %v843
      %v1223 = vpop.f32.mrf.mxu0
      %v1224 = vadd.f32 %v1127, %v1223
      %v1225 = vpop.f32.mrf.mxu0
      %v1226 = vpop.f32.mrf.mxu0
      %v1227 = vadd.f32 %v1130, %v1226
      %v1228 = vpop.f32.mrf.mxu0
      %1229 = vmatprep.mubr.bf16.mxu0 %v848
      %1230 = vmatmul.mubr.bf16.gmra.mxu0 %v847
      %v1231 = vpop.f32.mrf.mxu0
      %v1232 = vadd.f32 %v1135, %v1231
      %v1233 = vpop.f32.mrf.mxu0
      %v1234 = vpop.f32.mrf.mxu0
      %v1235 = vadd.f32 %v1138, %v1234
      %v1236 = vpop.f32.mrf.mxu0
      %1237 = vmatprep.mubr.bf16.mxu0 %v852
      %1238 = vmatmul.mubr.bf16.gmra.mxu0 %v851
      %v1239 = vpop.f32.mrf.mxu0
      %v1240 = vadd.f32 %v1143, %v1239
      %v1241 = vpop.f32.mrf.mxu0
      %v1242 = vpop.f32.mrf.mxu0
      %v1243 = vadd.f32 %v1146, %v1242
      %v1244 = vpop.f32.mrf.mxu0
      %1245 = vdwg.mxu0
      %1246 = vst [vmem:[%s226] sm:$0xff] %v1184
      %1247 = vst [vmem:[%s226 + $0x8] sm:$0xff] %v1187
      %1248 = vst [vmem:[%s226 + $0x10] sm:$0xff] %v1192
      %1249 = vst [vmem:[%s226 + $0x18] sm:$0xff] %v1195
      %1250 = vst [vmem:[%s226 + $0x20] sm:$0xff] %v1200
      %1251 = vst [vmem:[%s226 + $0x28] sm:$0xff] %v1203
      %1252 = vst [vmem:[%s226 + $0x30] sm:$0xff] %v1208
      %1253 = vst [vmem:[%s226 + $0x38] sm:$0xff] %v1211
      %1254 = vst [vmem:[%s226 + $0x40] sm:$0xff] %v1216
      %1255 = vst [vmem:[%s226 + $0x48] sm:$0xff] %v1219
      %1256 = vst [vmem:[%s226 + $0x50] sm:$0xff] %v1224
      %1257 = vst [vmem:[%s226 + $0x58] sm:$0xff] %v1227
      %1258 = vst [vmem:[%s226 + $0x60] sm:$0xff] %v1232
      %1259 = vst [vmem:[%s226 + $0x68] sm:$0xff] %v1235
      %1260 = vst [vmem:[%s226 + $0x70] sm:$0xff] %v1240
      %1261 = vst [vmem:[%s226 + $0x78] sm:$0xff] %v1243
      %s1262 = smul.u32 16, %s16
      %p1263 = scmp.lt.s32.totalorder %s1262, 63
      %s1264 = scalar_select %p1263, %s1262, 63
      %s1265 = smul.addr %s1264, 8
      %s1266 = scalar_lea.vmem %s5, %s1265
      // Predicated region
      $region41: #{linear_block_forward.1} parent=39 // pred_check
        %p1267 = pneg %p144
      $region42: #{linear_block_forward.1} parent=39 // pred_check_branch
        %1269 = sbr.rel (%p1267) target = $region44
      $region43: #{linear_block_forward.1} parent=39 // pred_region
        %s1270 = smul.u32 16, %s16
      $region44: #{linear_block_forward.1} parent=39 // pred_fallthru
        _
    $region40: #{linear_block_forward.1} parent=5 // pred_fallthru
      _
    %p1271 = scmp.le.s32.totalorder 2, %s11
    // Predicated region
    $region45: #{linear_block_forward.1} parent=5 // pred_check
      %p1272 = pneg %p1271
    $region46: #{linear_block_forward.1} parent=5 // pred_check_branch
      %1274 = sbr.rel (%p1272) target = $region48
    $region47: #{linear_block_forward.1} parent=5 // pred_region
      %s1275 = ssub.s32 %s11, 2
      // Predicated region
      $region49: #{linear_block_forward.1} parent=47 // pred_check
        %p1276 = pneg %p150
      $region50: #{linear_block_forward.1} parent=47 // pred_check_branch
        %1278 = sbr.rel (%p1276) target = $region52
      $region51: #{linear_block_forward.1} parent=47 // pred_region
        %s1279 = smul.u32 16, %s17
        %p1280 = scmp.lt.s32.totalorder %s1279, 63
        %s1281 = scalar_select %p1280, %s1279, 63
        %s1282 = smul.addr %s1281, 8
        %s1283 = scalar_lea.vmem %s5, %s1282
      $region52: #{linear_block_forward.1} parent=47 // pred_fallthru
        _
    $region48: #{linear_block_forward.1} parent=5 // pred_fallthru
      _
  $region6: #{linear_block_forward.1} parent=0 // loop_footer
    %s15 = sadd.s32 1, %s11
  $region7: #{linear_block_forward.1} parent=0 // loop_footer_branch
    %10 = sbr.rel target = $region3
  $region8: #{linear_block_forward.1} parent=0 // loop_exit
    _

// kernel: linear_block_forward.1
$region0: #{linear_block_forward.1}
  #allocation0 [shape = 'u32[]', space=smem, size = 0x4, offset = 0x4, fixed_abs, tag = 'smem constant byte address 0x4 - core index']
  #allocation1 [shape = 'u32[144,128]{1,0:T(1,128)}', space=vmem, size = 0x12000, scoped, tag = 'internal scratch']
  %s0 = inlined_call_operand.vmem [shape: f32[512,128], index: 0, kind: input, shape index: {}]
  %s1 = inlined_call_operand.vmem [shape: bf16[128,512], index: 1, kind: input, shape index: {}]
  %s2 = inlined_call_operand.vmem [shape: f32[1,512], index: 2, kind: input, shape index: {}]
  %s3 = inlined_call_operand.vmem [shape: bf16[512,128], index: 3, kind: input, shape index: {}]
  %s4 = inlined_call_operand.vmem [shape: f32[1,128], index: 4, kind: input, shape index: {}]
  %s5 = inlined_call_operand.vmem [shape: f32[512,128], index: 5, kind: output, shape index: {}]
  %s6 = sld [smem:[#allocation0]]
  $region53: #{linear_block_forward.1} parent=0
    _
  %s8 = ssub.s32 1, %s6
  %s9 = scalar_select 0, %s8, %s6
  loop: start=0, step=1, limit=6
  $region2: #{linear_block_forward.1} parent=0 // loop_pre_header
    _
  $region3: #{linear_block_forward.1} parent=0 // loop_header
    %s11 = sphi 0, %s15
    %p12 = scmp.ge.s32.totalorder %s11, 6
    %s21 = sphi 0, %s23
    %s24 = sphi 0, %s21
    %s25 = sphi 0, %s24
    %s41 = sphi 0, %s25
    %s45 = sphi 0, %s45
    %s47 = sphi 0, %s45
    %s48 = sphi 0, %s47
    %s62 = sphi 0, %s48
    %s66 = sphi 0, %s66
    %s68 = sphi 0, %s66
    %s69 = sphi 0, %s68
    %s83 = sphi 0, %s69
    %s87 = sphi 0, %s87
    %s89 = sphi 0, %s87
    %s90 = sphi 0, %s89
    %s104 = sphi 0, %s90
    %s108 = sphi 0, %s108
    %s110 = sphi 0, %s108
    %s111 = sphi 0, %s110
    %s125 = sphi 0, %s111
    %s131 = sphi 0, %s133
    %s134 = sphi 0, %s131
    %s135 = sphi 0, %s134
    %s151 = sphi 0, %s135
  $region4: #{linear_block_forward.1} parent=0 // loop_header_branch
    %14 = sbr.rel (%p12) target = $region8
  $region5: #{linear_block_forward.1} parent=0 // loop_body
    %s16 = ssub.s32 %s11, 1
    %s17 = ssub.s32 %s11, 2
    %s18 = sadd.s32 %s11, 1
    %s19 = ssub.s32 %s11, %s18
    %p20 = scmp.eq.s32.totalorder %s19, 0
    %s22 = sadd.s32 %s21, 1
    %s23 = scalar_select %p20, %s21, %s22
    %p26 = pneg %p20
    %p27 = scmp.eq.s32.totalorder %s11, 3
    %p28 = por %p26, %p27
    %p29 = scmp.ne.s32.totalorder %s21, %s24
    %p30 = scmp.eq.s32.totalorder %s11, 0
    %p31 = por %p29, %p30
    %p32 = scmp.ne.s32.totalorder %s21, %s24
    %p33 = scmp.eq.s32.totalorder %s16, 3
    %p34 = por %p32, %p33
    %p35 = scmp.ne.s32.totalorder %s24, %s25
    %p36 = scmp.eq.s32.totalorder %s16, 0
    %p37 = por %p35, %p36
    %p38 = scmp.ne.s32.totalorder %s24, %s25
    %p39 = scmp.eq.s32.totalorder %s17, 3
    %p40 = por %p38, %p39
    %p42 = scmp.ne.s32.totalorder %s25, %s41
    %p43 = scmp.eq.s32.totalorder %s17, 0
    %p44 = por %p42, %p43
    %s46 = sadd.s32 %s45, 1
    %p49 = scmp.eq.s32.totalorder %s11, 3
    %p50 = scmp.ne.s32.totalorder %s45, %s47
    %p51 = scmp.eq.s32.totalorder %s11, 0
    %p52 = por %p50, %p51
    %p53 = scmp.ne.s32.totalorder %s45, %s47
    %p54 = scmp.eq.s32.totalorder %s16, 3
    %p55 = por %p53, %p54
    %p56 = scmp.ne.s32.totalorder %s47, %s48
    %p57 = scmp.eq.s32.totalorder %s16, 0
    %p58 = por %p56, %p57
    %p59 = scmp.ne.s32.totalorder %s47, %s48
    %p60 = scmp.eq.s32.totalorder %s17, 3
    %p61 = por %p59, %p60
    %p63 = scmp.ne.s32.totalorder %s48, %s62
    %p64 = scmp.eq.s32.totalorder %s17, 0
    %p65 = por %p63, %p64
    %s67 = sadd.s32 %s66, 1
    %p70 = scmp.eq.s32.totalorder %s11, 3
    %p71 = scmp.ne.s32.totalorder %s66, %s68
    %p72 = scmp.eq.s32.totalorder %s11, 0
    %p73 = por %p71, %p72
    %p74 = scmp.ne.s32.totalorder %s66, %s68
    %p75 = scmp.eq.s32.totalorder %s16, 3
    %p76 = por %p74, %p75
    %p77 = scmp.ne.s32.totalorder %s68, %s69
    %p78 = scmp.eq.s32.totalorder %s16, 0
    %p79 = por %p77, %p78
    %p80 = scmp.ne.s32.totalorder %s68, %s69
    %p81 = scmp.eq.s32.totalorder %s17, 3
    %p82 = por %p80, %p81
    %p84 = scmp.ne.s32.totalorder %s69, %s83
    %p85 = scmp.eq.s32.totalorder %s17, 0
    %p86 = por %p84, %p85
    %s88 = sadd.s32 %s87, 1
    %p91 = scmp.eq.s32.totalorder %s11, 3
    %p92 = scmp.ne.s32.totalorder %s87, %s89
    %p93 = scmp.eq.s32.totalorder %s11, 0
    %p94 = por %p92, %p93
    %p95 = scmp.ne.s32.totalorder %s87, %s89
    %p96 = scmp.eq.s32.totalorder %s16, 3
    %p97 = por %p95, %p96
    %p98 = scmp.ne.s32.totalorder %s89, %s90
    %p99 = scmp.eq.s32.totalorder %s16, 0
    %p100 = por %p98, %p99
    %p101 = scmp.ne.s32.totalorder %s89, %s90
    %p102 = scmp.eq.s32.totalorder %s17, 3
    %p103 = por %p101, %p102
    %p105 = scmp.ne.s32.totalorder %s90, %s104
    %p106 = scmp.eq.s32.totalorder %s17, 0
    %p107 = por %p105, %p106
    %s109 = sadd.s32 %s108, 1
    %p112 = scmp.eq.s32.totalorder %s11, 3
    %p113 = scmp.ne.s32.totalorder %s108, %s110
    %p114 = scmp.eq.s32.totalorder %s11, 0
    %p115 = por %p113, %p114
    %p116 = scmp.ne.s32.totalorder %s108, %s110
    %p117 = scmp.eq.s32.totalorder %s16, 3
    %p118 = por %p116, %p117
    %p119 = scmp.ne.s32.totalorder %s110, %s111
    %p120 = scmp.eq.s32.totalorder %s16, 0
    %p121 = por %p119, %p120
    %p122 = scmp.ne.s32.totalorder %s110, %s111
    %p123 = scmp.eq.s32.totalorder %s17, 3
    %p124 = por %p122, %p123
    %p126 = scmp.ne.s32.totalorder %s111, %s125
    %p127 = scmp.eq.s32.totalorder %s17, 0
    %p128 = por %p126, %p127
    %s129 = ssub.s32 %s11, %s18
    %p130 = scmp.eq.s32.totalorder %s129, 0
    %s132 = sadd.s32 %s131, 1
    %s133 = scalar_select %p130, %s131, %s132
    %p136 = pneg %p130
    %p137 = scmp.eq.s32.totalorder %s11, 3
    %p138 = por %p136, %p137
    %p139 = scmp.ne.s32.totalorder %s131, %s134
    %p140 = scmp.eq.s32.totalorder %s11, 0
    %p141 = por %p139, %p140
    %p142 = scmp.ne.s32.totalorder %s131, %s134
    %p143 = scmp.eq.s32.totalorder %s16, 3
    %p144 = por %p142, %p143
    %p145 = scmp.ne.s32.totalorder %s134, %s135
    %p146 = scmp.eq.s32.totalorder %s16, 0
    %p147 = por %p145, %p146
    %p148 = scmp.ne.s32.totalorder %s134, %s135
    %p149 = scmp.eq.s32.totalorder %s17, 3
    %p150 = por %p148, %p149
    %p152 = scmp.ne.s32.totalorder %s135, %s151
    %p153 = scmp.eq.s32.totalorder %s17, 0
    %p154 = por %p152, %p153
    %p155 = scmp.le.s32.totalorder 1, %s11
    %p156 = scmp.lt.s32.totalorder %s11, 5
    %p157 = pnand %p155, %p156
    %p158 = pneg %p157
    // Predicated region
    $region9: #{linear_block_forward.1} parent=5 // pred_check
      _
    $region10: #{linear_block_forward.1} parent=5 // pred_check_branch
      %160 = sbr.rel (%p157) target = $region12
    $region11: #{linear_block_forward.1} parent=5 // pred_region
      %s161 = ssub.s32 %s11, 1
      // Predicated region
      $region13: #{linear_block_forward.1} parent=11 // pred_check
        %p162 = pneg %p58
      $region14: #{linear_block_forward.1} parent=11 // pred_check_branch
        %164 = sbr.rel (%p162) target = $region16
      $region15: #{linear_block_forward.1} parent=11 // pred_region
        _
      $region16: #{linear_block_forward.1} parent=11 // pred_fallthru
        _
      // Predicated region
      $region17: #{linear_block_forward.1} parent=11 // pred_check
        %p165 = pneg %p79
      $region18: #{linear_block_forward.1} parent=11 // pred_check_branch
        %167 = sbr.rel (%p165) target = $region20
      $region19: #{linear_block_forward.1} parent=11 // pred_region
        _
      $region20: #{linear_block_forward.1} parent=11 // pred_fallthru
        _
      // Predicated region
      $region21: #{linear_block_forward.1} parent=11 // pred_check
        %p168 = pneg %p100
      $region22: #{linear_block_forward.1} parent=11 // pred_check_branch
        %170 = sbr.rel (%p168) target = $region24
      $region23: #{linear_block_forward.1} parent=11 // pred_region
        _
      $region24: #{linear_block_forward.1} parent=11 // pred_fallthru
        _
      // Predicated region
      $region25: #{linear_block_forward.1} parent=11 // pred_check
        %p171 = pneg %p121
      $region26: #{linear_block_forward.1} parent=11 // pred_check_branch
        %173 = sbr.rel (%p171) target = $region28
      $region27: #{linear_block_forward.1} parent=11 // pred_region
        _
      $region28: #{linear_block_forward.1} parent=11 // pred_fallthru
        _
    $region12: #{linear_block_forward.1} parent=5 // pred_fallthru
      _
    %p174 = scmp.lt.s32.totalorder %s11, 4
    // Predicated region
    $region29: #{linear_block_forward.1} parent=5 // pred_check
      %p175 = pneg %p174
    $region30: #{linear_block_forward.1} parent=5 // pred_check_branch
      %177 = sbr.rel (%p175) target = $region32
    $region31: #{linear_block_forward.1} parent=5 // pred_region
      // Predicated region
      $region33: #{linear_block_forward.1} parent=31 // pred_check
        %p178 = pneg %p31
      $region34: #{linear_block_forward.1} parent=31 // pred_check_branch
        %180 = sbr.rel (%p178) target = $region36
      $region35: #{linear_block_forward.1} parent=31 // pred_region
        %s181 = smul.u32 16, %s11
        %p182 = scmp.lt.s32.totalorder %s181, 63
        %s183 = scalar_select %p182, %s181, 63
        %s184 = smul.addr %s183, 8
        %s185 = scalar_lea.vmem %s0, %s184
        %s186 = smul.u32 16, %s11
      $region36: #{linear_block_forward.1} parent=31 // pred_fallthru
        _
    $region32: #{linear_block_forward.1} parent=5 // pred_fallthru
      _
    %p187 = scmp.le.s32.totalorder 1, %s11
    %p188 = scmp.lt.s32.totalorder %s11, 5
    %p189 = pnand %p187, %p188
    %p190 = pneg %p189
    // Predicated region
    $region37: #{linear_block_forward.1} parent=5 // pred_check
      _
    $region38: #{linear_block_forward.1} parent=5 // pred_check_branch
      %192 = sbr.rel (%p189) target = $region40
    $region39: #{linear_block_forward.1} parent=5 // pred_region
      %s193 = ssub.s32 %s11, 1
      %s194 = smul.u32 16, %s16
      %p195 = scmp.lt.s32.totalorder %s194, 63
      %s196 = scalar_select %p195, %s194, 63
      %s197 = smul.addr %s196, 8
      %s198 = scalar_lea.vmem %s0, %s197
      %p199 = pneg %p37
      %p200 = pneg %p34
      %p201 = pneg %p58
      %p202 = pneg %p55
      %p203 = pneg %p79
      %p204 = pneg %p76
      %p205 = pneg %p100
      %p206 = pneg %p97
      %p207 = pneg %p121
      %p208 = pneg %p118
      %p209 = pneg %p147
      %p210 = pneg %p144
      %s211 = smul.u32 16, %s16
      %p212 = scmp.lt.s32.totalorder %s211, 63
      %s213 = scalar_select %p212, %s211, 63
      %s214 = smul.addr %s213, 8
      %s215 = scalar_lea.vmem %s5, %s214
      %s216 = smul.u32 16, %s16
      %p217 = scmp.lt.s32.totalorder %s216, 63
      %s218 = scalar_select %p217, %s216, 63
      %s219 = smul.addr %s218, 8
      %s220 = scalar_lea.vmem %s0, %s219
      %s221 = smul.u32 16, %s16
      %s222 = smul.u32 16, %s16
      %p223 = scmp.lt.s32.totalorder %s222, 63
      %s224 = scalar_select %p223, %s222, 63
      %s225 = smul.addr %s224, 8
      %s226 = scalar_lea.vmem %s5, %s225
      %s227 = smul.u32 16, %s16
      %v229 = vld [vmem:[%s1] sm:$0xff]
      %v230 = vld [vmem:[%s1 + $0x8] sm:$0xff]
      %v231 = vld [vmem:[%s1 + $0x10] sm:$0xff]
      %v232 = vld [vmem:[%s1 + $0x18] sm:$0xff]
      %v233 = vld [vmem:[%s1 + $0x20] sm:$0xff]
      %v234 = vld [vmem:[%s1 + $0x28] sm:$0xff]
      %v235 = vld [vmem:[%s1 + $0x30] sm:$0xff]
      %v236 = vld [vmem:[%s1 + $0x38] sm:$0xff]
      %v237 = vld [vmem:[%s1 + $0x40] sm:$0xff]
      %v238 = vld [vmem:[%s1 + $0x48] sm:$0xff]
      %v239 = vld [vmem:[%s1 + $0x50] sm:$0xff]
      %v240 = vld [vmem:[%s1 + $0x58] sm:$0xff]
      %v241 = vld [vmem:[%s1 + $0x60] sm:$0xff]
      %v242 = vld [vmem:[%s1 + $0x68] sm:$0xff]
      %v243 = vld [vmem:[%s1 + $0x70] sm:$0xff]
      %v244 = vld [vmem:[%s1 + $0x78] sm:$0xff]
      %v245 = vld [vmem:[%s1 + $0x80] sm:$0xff]
      %v246 = vld [vmem:[%s1 + $0x88] sm:$0xff]
      %v247 = vld [vmem:[%s1 + $0x90] sm:$0xff]
      %v248 = vld [vmem:[%s1 + $0x98] sm:$0xff]
      %v249 = vld [vmem:[%s1 + $0xa0] sm:$0xff]
      %v250 = vld [vmem:[%s1 + $0xa8] sm:$0xff]
      %v251 = vld [vmem:[%s1 + $0xb0] sm:$0xff]
      %v252 = vld [vmem:[%s1 + $0xb8] sm:$0xff]
      %v253 = vld [vmem:[%s1 + $0xc0] sm:$0xff]
      %v254 = vld [vmem:[%s1 + $0xc8] sm:$0xff]
      %v255 = vld [vmem:[%s1 + $0xd0] sm:$0xff]
      %v256 = vld [vmem:[%s1 + $0xd8] sm:$0xff]
      %v257 = vld [vmem:[%s1 + $0xe0] sm:$0xff]
      %v258 = vld [vmem:[%s1 + $0xe8] sm:$0xff]
      %v259 = vld [vmem:[%s1 + $0xf0] sm:$0xff]
      %v260 = vld [vmem:[%s1 + $0xf8] sm:$0xff]
      %v261 = vld [vmem:[%s3] sm:$0xf]
      %v262 = vld [vmem:[%s3 + $0x4] sm:$0xf]
      %v263 = vld [vmem:[%s3 + $0x8] sm:$0xf]
      %v264 = vld [vmem:[%s3 + $0xc] sm:$0xf]
      %v265 = vld [vmem:[%s3 + $0x10] sm:$0xf]
      %v266 = vld [vmem:[%s3 + $0x14] sm:$0xf]
      %v267 = vld [vmem:[%s3 + $0x18] sm:$0xf]
      %v268 = vld [vmem:[%s3 + $0x1c] sm:$0xf]
      %v269 = vld [vmem:[%s3 + $0x20] sm:$0xf]
      %v270 = vld [vmem:[%s3 + $0x24] sm:$0xf]
      %v271 = vld [vmem:[%s3 + $0x28] sm:$0xf]
      %v272 = vld [vmem:[%s3 + $0x2c] sm:$0xf]
      %v273 = vld [vmem:[%s3 + $0x30] sm:$0xf]
      %v274 = vld [vmem:[%s3 + $0x34] sm:$0xf]
      %v275 = vld [vmem:[%s3 + $0x38] sm:$0xf]
      %v276 = vld [vmem:[%s3 + $0x3c] sm:$0xf]
      %v277 = vld [vmem:[%s3 + $0x40] sm:$0xf]
      %v278 = vld [vmem:[%s3 + $0x44] sm:$0xf]
      %v279 = vld [vmem:[%s3 + $0x48] sm:$0xf]
      %v280 = vld [vmem:[%s3 + $0x4c] sm:$0xf]
      %v281 = vld [vmem:[%s3 + $0x50] sm:$0xf]
      %v282 = vld [vmem:[%s3 + $0x54] sm:$0xf]
      %v283 = vld [vmem:[%s3 + $0x58] sm:$0xf]
      %v284 = vld [vmem:[%s3 + $0x5c] sm:$0xf]
      %v285 = vld [vmem:[%s3 + $0x60] sm:$0xf]
      %v286 = vld [vmem:[%s3 + $0x64] sm:$0xf]
      %v287 = vld [vmem:[%s3 + $0x68] sm:$0xf]
      %v288 = vld [vmem:[%s3 + $0x6c] sm:$0xf]
      %v289 = vld [vmem:[%s3 + $0x70] sm:$0xf]
      %v290 = vld [vmem:[%s3 + $0x74] sm:$0xf]
      %v291 = vld [vmem:[%s3 + $0x78] sm:$0xf]
      %v292 = vld [vmem:[%s3 + $0x7c] sm:$0xf]
      %v293 = vld [vmem:[%s3 + $0x80] sm:$0xf]
      %v294 = vld [vmem:[%s3 + $0x84] sm:$0xf]
      %v295 = vld [vmem:[%s3 + $0x88] sm:$0xf]
      %v296 = vld [vmem:[%s3 + $0x8c] sm:$0xf]
      %v297 = vld [vmem:[%s3 + $0x90] sm:$0xf]
      %v298 = vld [vmem:[%s3 + $0x94] sm:$0xf]
      %v299 = vld [vmem:[%s3 + $0x98] sm:$0xf]
      %v300 = vld [vmem:[%s3 + $0x9c] sm:$0xf]
      %v301 = vld [vmem:[%s3 + $0xa0] sm:$0xf]
      %v302 = vld [vmem:[%s3 + $0xa4] sm:$0xf]
      %v303 = vld [vmem:[%s3 + $0xa8] sm:$0xf]
      %v304 = vld [vmem:[%s3 + $0xac] sm:$0xf]
      %v305 = vld [vmem:[%s3 + $0xb0] sm:$0xf]
      %v306 = vld [vmem:[%s3 + $0xb4] sm:$0xf]
      %v307 = vld [vmem:[%s3 + $0xb8] sm:$0xf]
      %v308 = vld [vmem:[%s3 + $0xbc] sm:$0xf]
      %v309 = vld [vmem:[%s3 + $0xc0] sm:$0xf]
      %v310 = vld [vmem:[%s3 + $0xc4] sm:$0xf]
      %v311 = vld [vmem:[%s3 + $0xc8] sm:$0xf]
      %v312 = vld [vmem:[%s3 + $0xcc] sm:$0xf]
      %v313 = vld [vmem:[%s3 + $0xd0] sm:$0xf]
      %v314 = vld [vmem:[%s3 + $0xd4] sm:$0xf]
      %v315 = vld [vmem:[%s3 + $0xd8] sm:$0xf]
      %v316 = vld [vmem:[%s3 + $0xdc] sm:$0xf]
      %v317 = vld [vmem:[%s3 + $0xe0] sm:$0xf]
      %v318 = vld [vmem:[%s3 + $0xe4] sm:$0xf]
      %v319 = vld [vmem:[%s3 + $0xe8] sm:$0xf]
      %v320 = vld [vmem:[%s3 + $0xec] sm:$0xf]
      %v321 = vld [vmem:[%s3 + $0xf0] sm:$0xf]
      %v322 = vld [vmem:[%s3 + $0xf4] sm:$0xf]
      %v323 = vld [vmem:[%s3 + $0xf8] sm:$0xf]
      %v324 = vld [vmem:[%s3 + $0xfc] sm:$0xf]
      %v325 = vld [vmem:[%s220] sm:$0xff]
      %v326 = vld [vmem:[%s220 + $0x8] sm:$0xff]
      %v327 = vld [vmem:[%s220 + $0x10] sm:$0xff]
      %v328 = vld [vmem:[%s220 + $0x18] sm:$0xff]
      %v329 = vld [vmem:[%s220 + $0x20] sm:$0xff]
      %v330 = vld [vmem:[%s220 + $0x28] sm:$0xff]
      %v331 = vld [vmem:[%s220 + $0x30] sm:$0xff]
      %v332 = vld [vmem:[%s220 + $0x38] sm:$0xff]
      %v333 = vld [vmem:[%s220 + $0x40] sm:$0xff]
      %v334 = vld [vmem:[%s220 + $0x48] sm:$0xff]
      %v335 = vld [vmem:[%s220 + $0x50] sm:$0xff]
      %v336 = vld [vmem:[%s220 + $0x58] sm:$0xff]
      %v337 = vld [vmem:[%s220 + $0x60] sm:$0xff]
      %v338 = vld [vmem:[%s220 + $0x68] sm:$0xff]
      %v339 = vld [vmem:[%s220 + $0x70] sm:$0xff]
      %v340 = vld [vmem:[%s220 + $0x78] sm:$0xff]
      %v341 = vpack.c.bf16 %v326, %v325
      %v342 = vpack.c.bf16 %v328, %v327
      %v343 = vpack.c.bf16 %v330, %v329
      %v344 = vpack.c.bf16 %v332, %v331
      %v345 = vpack.c.bf16 %v334, %v333
      %v346 = vpack.c.bf16 %v336, %v335
      %v347 = vpack.c.bf16 %v338, %v337
      %v348 = vpack.c.bf16 %v340, %v339
      %v349 = vld [vmem:[%s2] sm:$0xf]
      %v351 = vlaneseq
      %v352 = vshrl.u32 %v351, 7
      %v353 = vsub.s32 0, %v352
      %v354 = vrot.slane %v349, %v353
      %v355 = vlaneseq
      %v356 = vshrl.u32 %v355, 7
      %v357 = vsub.s32 1, %v356
      %v358 = vrot.slane %v349, %v357
      %v359 = vlaneseq
      %v360 = vshrl.u32 %v359, 7
      %v361 = vsub.s32 2, %v360
      %v362 = vrot.slane %v349, %v361
      %v363 = vlaneseq
      %v364 = vshrl.u32 %v363, 7
      %v365 = vsub.s32 3, %v364
      %v366 = vrot.slane %v349, %v365
      %v403 = vunpack.c.l.b16 %v229
      %v404 = vunpack.c.h.b16 %v229
      %v405 = vunpack.c.l.b16 %v230
      %v406 = vunpack.c.h.b16 %v230
      %v407 = vunpack.c.l.b16 %v231
      %v408 = vunpack.c.h.b16 %v231
      %v409 = vunpack.c.l.b16 %v232
      %v410 = vunpack.c.h.b16 %v232
      %v411 = vunpack.c.l.b16 %v233
      %v412 = vunpack.c.h.b16 %v233
      %v413 = vunpack.c.l.b16 %v234
      %v414 = vunpack.c.h.b16 %v234
      %v415 = vunpack.c.l.b16 %v235
      %v416 = vunpack.c.h.b16 %v235
      %v417 = vunpack.c.l.b16 %v236
      %v418 = vunpack.c.h.b16 %v236
      %v419 = vunpack.c.l.b16 %v237
      %v420 = vunpack.c.h.b16 %v237
      %v421 = vunpack.c.l.b16 %v238
      %v422 = vunpack.c.h.b16 %v238
      %v423 = vunpack.c.l.b16 %v239
      %v424 = vunpack.c.h.b16 %v239
      %v425 = vunpack.c.l.b16 %v240
      %v426 = vunpack.c.h.b16 %v240
      %v427 = vunpack.c.l.b16 %v241
      %v428 = vunpack.c.h.b16 %v241
      %v429 = vunpack.c.l.b16 %v242
      %v430 = vunpack.c.h.b16 %v242
      %v431 = vunpack.c.l.b16 %v243
      %v432 = vunpack.c.h.b16 %v243
      %v433 = vunpack.c.l.b16 %v244
      %v434 = vunpack.c.h.b16 %v244
      %v435 = vunpack.c.l.b16 %v245
      %v436 = vunpack.c.h.b16 %v245
      %v437 = vunpack.c.l.b16 %v246
      %v438 = vunpack.c.h.b16 %v246
      %v439 = vunpack.c.l.b16 %v247
      %v440 = vunpack.c.h.b16 %v247
      %v441 = vunpack.c.l.b16 %v248
      %v442 = vunpack.c.h.b16 %v248
      %v443 = vunpack.c.l.b16 %v249
      %v444 = vunpack.c.h.b16 %v249
      %v445 = vunpack.c.l.b16 %v250
      %v446 = vunpack.c.h.b16 %v250
      %v447 = vunpack.c.l.b16 %v251
      %v448 = vunpack.c.h.b16 %v251
      %v449 = vunpack.c.l.b16 %v252
      %v450 = vunpack.c.h.b16 %v252
      %v451 = vunpack.c.l.b16 %v253
      %v452 = vunpack.c.h.b16 %v253
      %v453 = vunpack.c.l.b16 %v254
      %v454 = vunpack.c.h.b16 %v254
      %v455 = vunpack.c.l.b16 %v255
      %v456 = vunpack.c.h.b16 %v255
      %v457 = vunpack.c.l.b16 %v256
      %v458 = vunpack.c.h.b16 %v256
      %v459 = vunpack.c.l.b16 %v257
      %v460 = vunpack.c.h.b16 %v257
      %v461 = vunpack.c.l.b16 %v258
      %v462 = vunpack.c.h.b16 %v258
      %v463 = vunpack.c.l.b16 %v259
      %v464 = vunpack.c.h.b16 %v259
      %v465 = vunpack.c.l.b16 %v260
      %v466 = vunpack.c.h.b16 %v260
      %v467 = vpack.c.b16 %v407, %v403
      %v468 = vpack.c.b16 %v408, %v404
      %v469 = vpack.c.b16 %v409, %v405
      %v470 = vpack.c.b16 %v410, %v406
      %v471 = vpack.c.b16 %v415, %v411
      %v472 = vpack.c.b16 %v416, %v412
      %v473 = vpack.c.b16 %v417, %v413
      %v474 = vpack.c.b16 %v418, %v414
      %v475 = vpack.c.b16 %v423, %v419
      %v476 = vpack.c.b16 %v424, %v420
      %v477 = vpack.c.b16 %v425, %v421
      %v478 = vpack.c.b16 %v426, %v422
      %v479 = vpack.c.b16 %v431, %v427
      %v480 = vpack.c.b16 %v432, %v428
      %v481 = vpack.c.b16 %v433, %v429
      %v482 = vpack.c.b16 %v434, %v430
      %v483 = vpack.c.b16 %v439, %v435
      %v484 = vpack.c.b16 %v440, %v436
      %v485 = vpack.c.b16 %v441, %v437
      %v486 = vpack.c.b16 %v442, %v438
      %v487 = vpack.c.b16 %v447, %v443
      %v488 = vpack.c.b16 %v448, %v444
      %v489 = vpack.c.b16 %v449, %v445
      %v490 = vpack.c.b16 %v450, %v446
      %v491 = vpack.c.b16 %v455, %v451
      %v492 = vpack.c.b16 %v456, %v452
      %v493 = vpack.c.b16 %v457, %v453
      %v494 = vpack.c.b16 %v458, %v454
      %v495 = vpack.c.b16 %v463, %v459
      %v496 = vpack.c.b16 %v464, %v460
      %v497 = vpack.c.b16 %v465, %v461
      %v498 = vpack.c.b16 %v466, %v462
      %531 = vmatprep.subr.bf16.mxu0 %v496
      %532 = vmatpush1.bf16.msra.mxu0 %v495
      %533 = vmatprep.subr.bf16.mxu0 %v492
      %534 = vmatpush1.bf16.msra.mxu0 %v491
      %535 = vmatprep.subr.bf16.mxu0 %v488
      %536 = vmatpush1.bf16.msra.mxu0 %v487
      %537 = vmatprep.subr.bf16.mxu0 %v484
      %538 = vmatpush1.bf16.msra.mxu0 %v483
      %539 = vmatprep.subr.bf16.mxu0 %v480
      %540 = vmatpush1.bf16.msra.mxu0 %v479
      %541 = vmatprep.subr.bf16.mxu0 %v476
      %542 = vmatpush1.bf16.msra.mxu0 %v475
      %543 = vmatprep.subr.bf16.mxu0 %v472
      %544 = vmatpush1.bf16.msra.mxu0 %v471
      %545 = vmatprep.subr.bf16.mxu0 %v468
      %546 = vmatpush1.bf16.msra.mxu0 %v467
      %547 = vmatprep.subr.bf16.mxu0 0
      %548 = vmatpush2.bf16.msra.mxu0 0
      %549 = vmatprep.subr.bf16.mxu0 0
      %550 = vmatpush2.bf16.msra.mxu0 0
      %551 = vmatprep.subr.bf16.mxu0 0
      %552 = vmatpush2.bf16.msra.mxu0 0
      %553 = vmatprep.subr.bf16.mxu0 0
      %554 = vmatpush2.bf16.msra.mxu0 0
      %555 = vmatprep.subr.bf16.mxu0 0
      %556 = vmatpush2.bf16.msra.mxu0 0
      %557 = vmatprep.subr.bf16.mxu0 0
      %558 = vmatpush2.bf16.msra.mxu0 0
      %559 = vmatprep.subr.bf16.mxu0 0
      %560 = vmatpush2.bf16.msra.mxu0 0
      %561 = vmatprep.subr.bf16.mxu0 0
      %562 = vmatpush2.bf16.msra.mxu0 0
      %563 = vmatprep.mubr.bf16.mxu0 0
      %564 = vmatmul.mubr.bf16.gmra.mxu0 %v341
      %v565 = vpop.f32.mrf.mxu0
      %v566 = vadd.f32 %v354, %v565
      %v567 = vpop.f32.mrf.mxu0
      %v568 = vadd.f32 %v358, %v567
      %v569 = vpop.f32.mrf.mxu0
      %v570 = vadd.f32 %v354, %v569
      %v571 = vpop.f32.mrf.mxu0
      %v572 = vadd.f32 %v358, %v571
      %573 = vmatprep.mubr.bf16.mxu0 0
      %574 = vmatmul.mubr.bf16.gmra.mxu0 %v342
      %v575 = vpop.f32.mrf.mxu0
      %v576 = vadd.f32 %v354, %v575
      %v577 = vpop.f32.mrf.mxu0
      %v578 = vadd.f32 %v358, %v577
      %v579 = vpop.f32.mrf.mxu0
      %v580 = vadd.f32 %v354, %v579
      %v581 = vpop.f32.mrf.mxu0
      %v582 = vadd.f32 %v358, %v581
      %583 = vmatprep.mubr.bf16.mxu0 0
      %584 = vmatmul.mubr.bf16.gmra.mxu0 %v343
      %v585 = vpop.f32.mrf.mxu0
      %v586 = vadd.f32 %v354, %v585
      %v587 = vpop.f32.mrf.mxu0
      %v588 = vadd.f32 %v358, %v587
      %v589 = vpop.f32.mrf.mxu0
      %v590 = vadd.f32 %v354, %v589
      %v591 = vpop.f32.mrf.mxu0
      %v592 = vadd.f32 %v358, %v591
      %593 = vmatprep.mubr.bf16.mxu0 0
      %594 = vmatmul.mubr.bf16.gmra.mxu0 %v344
      %v595 = vpop.f32.mrf.mxu0
      %v596 = vadd.f32 %v354, %v595
      %v597 = vpop.f32.mrf.mxu0
      %v598 = vadd.f32 %v358, %v597
      %v599 = vpop.f32.mrf.mxu0
      %v600 = vadd.f32 %v354, %v599
      %v601 = vpop.f32.mrf.mxu0
      %v602 = vadd.f32 %v358, %v601
      %603 = vmatprep.mubr.bf16.mxu0 0
      %604 = vmatmul.mubr.bf16.gmra.mxu0 %v345
      %v605 = vpop.f32.mrf.mxu0
      %v606 = vadd.f32 %v354, %v605
      %v607 = vpop.f32.mrf.mxu0
      %v608 = vadd.f32 %v358, %v607
      %v609 = vpop.f32.mrf.mxu0
      %v610 = vadd.f32 %v354, %v609
      %v611 = vpop.f32.mrf.mxu0
      %v612 = vadd.f32 %v358, %v611
      %613 = vmatprep.mubr.bf16.mxu0 0
      %614 = vmatmul.mubr.bf16.gmra.mxu0 %v346
      %v615 = vpop.f32.mrf.mxu0
      %v616 = vadd.f32 %v354, %v615
      %v617 = vpop.f32.mrf.mxu0
      %v618 = vadd.f32 %v358, %v617
      %v619 = vpop.f32.mrf.mxu0
      %v620 = vadd.f32 %v354, %v619
      %v621 = vpop.f32.mrf.mxu0
      %v622 = vadd.f32 %v358, %v621
      %623 = vmatprep.mubr.bf16.mxu0 0
      %624 = vmatmul.mubr.bf16.gmra.mxu0 %v347
      %v625 = vpop.f32.mrf.mxu0
      %v626 = vadd.f32 %v354, %v625
      %v627 = vpop.f32.mrf.mxu0
      %v628 = vadd.f32 %v358, %v627
      %v629 = vpop.f32.mrf.mxu0
      %v630 = vadd.f32 %v354, %v629
      %v631 = vpop.f32.mrf.mxu0
      %v632 = vadd.f32 %v358, %v631
      %633 = vmatprep.mubr.bf16.mxu0 0
      %634 = vmatmul.mubr.bf16.gmra.mxu0 %v348
      %v635 = vpop.f32.mrf.mxu0
      %v636 = vadd.f32 %v354, %v635
      %v637 = vpop.f32.mrf.mxu0
      %v638 = vadd.f32 %v358, %v637
      %v639 = vpop.f32.mrf.mxu0
      %v640 = vadd.f32 %v354, %v639
      %v641 = vpop.f32.mrf.mxu0
      %v642 = vadd.f32 %v358, %v641
      %643 = vdwg.mxu0
      %644 = vmatprep.subr.bf16.mxu0 %v498
      %645 = vmatpush1.bf16.msra.mxu0 %v497
      %646 = vmatprep.subr.bf16.mxu0 %v494
      %647 = vmatpush1.bf16.msra.mxu0 %v493
      %648 = vmatprep.subr.bf16.mxu0 %v490
      %649 = vmatpush1.bf16.msra.mxu0 %v489
      %650 = vmatprep.subr.bf16.mxu0 %v486
      %651 = vmatpush1.bf16.msra.mxu0 %v485
      %652 = vmatprep.subr.bf16.mxu0 %v482
      %653 = vmatpush1.bf16.msra.mxu0 %v481
      %654 = vmatprep.subr.bf16.mxu0 %v478
      %655 = vmatpush1.bf16.msra.mxu0 %v477
      %656 = vmatprep.subr.bf16.mxu0 %v474
      %657 = vmatpush1.bf16.msra.mxu0 %v473
      %658 = vmatprep.subr.bf16.mxu0 %v470
      %659 = vmatpush1.bf16.msra.mxu0 %v469
      %660 = vmatprep.subr.bf16.mxu0 0
      %661 = vmatpush2.bf16.msra.mxu0 0
      %662 = vmatprep.subr.bf16.mxu0 0
      %663 = vmatpush2.bf16.msra.mxu0 0
      %664 = vmatprep.subr.bf16.mxu0 0
      %665 = vmatpush2.bf16.msra.mxu0 0
      %666 = vmatprep.subr.bf16.mxu0 0
      %667 = vmatpush2.bf16.msra.mxu0 0
      %668 = vmatprep.subr.bf16.mxu0 0
      %669 = vmatpush2.bf16.msra.mxu0 0
      %670 = vmatprep.subr.bf16.mxu0 0
      %671 = vmatpush2.bf16.msra.mxu0 0
      %672 = vmatprep.subr.bf16.mxu0 0
      %673 = vmatpush2.bf16.msra.mxu0 0
      %674 = vmatprep.subr.bf16.mxu0 0
      %675 = vmatpush2.bf16.msra.mxu0 0
      %676 = vmatprep.mubr.bf16.mxu0 0
      %677 = vmatmul.mubr.bf16.gmra.mxu0 %v341
      %v678 = vpop.f32.mrf.mxu0
      %v679 = vadd.f32 %v362, %v678
      %v680 = vpop.f32.mrf.mxu0
      %v681 = vadd.f32 %v366, %v680
      %v682 = vpop.f32.mrf.mxu0
      %v683 = vadd.f32 %v362, %v682
      %v684 = vpop.f32.mrf.mxu0
      %v685 = vadd.f32 %v366, %v684
      %686 = vmatprep.mubr.bf16.mxu0 0
      %687 = vmatmul.mubr.bf16.gmra.mxu0 %v342
      %v688 = vpop.f32.mrf.mxu0
      %v689 = vadd.f32 %v362, %v688
      %v690 = vpop.f32.mrf.mxu0
      %v691 = vadd.f32 %v366, %v690
      %v692 = vpop.f32.mrf.mxu0
      %v693 = vadd.f32 %v362, %v692
      %v694 = vpop.f32.mrf.mxu0
      %v695 = vadd.f32 %v366, %v694
      %696 = vmatprep.mubr.bf16.mxu0 0
      %697 = vmatmul.mubr.bf16.gmra.mxu0 %v343
      %v698 = vpop.f32.mrf.mxu0
      %v699 = vadd.f32 %v362, %v698
      %v700 = vpop.f32.mrf.mxu0
      %v701 = vadd.f32 %v366, %v700
      %v702 = vpop.f32.mrf.mxu0
      %v703 = vadd.f32 %v362, %v702
      %v704 = vpop.f32.mrf.mxu0
      %v705 = vadd.f32 %v366, %v704
      %706 = vmatprep.mubr.bf16.mxu0 0
      %707 = vmatmul.mubr.bf16.gmra.mxu0 %v344
      %v708 = vpop.f32.mrf.mxu0
      %v709 = vadd.f32 %v362, %v708
      %v710 = vpop.f32.mrf.mxu0
      %v711 = vadd.f32 %v366, %v710
      %v712 = vpop.f32.mrf.mxu0
      %v713 = vadd.f32 %v362, %v712
      %v714 = vpop.f32.mrf.mxu0
      %v715 = vadd.f32 %v366, %v714
      %716 = vmatprep.mubr.bf16.mxu0 0
      %717 = vmatmul.mubr.bf16.gmra.mxu0 %v345
      %v718 = vpop.f32.mrf.mxu0
      %v719 = vadd.f32 %v362, %v718
      %v720 = vpop.f32.mrf.mxu0
      %v721 = vadd.f32 %v366, %v720
      %v722 = vpop.f32.mrf.mxu0
      %v723 = vadd.f32 %v362, %v722
      %v724 = vpop.f32.mrf.mxu0
      %v725 = vadd.f32 %v366, %v724
      %726 = vmatprep.mubr.bf16.mxu0 0
      %727 = vmatmul.mubr.bf16.gmra.mxu0 %v346
      %v728 = vpop.f32.mrf.mxu0
      %v729 = vadd.f32 %v362, %v728
      %v730 = vpop.f32.mrf.mxu0
      %v731 = vadd.f32 %v366, %v730
      %v732 = vpop.f32.mrf.mxu0
      %v733 = vadd.f32 %v362, %v732
      %v734 = vpop.f32.mrf.mxu0
      %v735 = vadd.f32 %v366, %v734
      %736 = vmatprep.mubr.bf16.mxu0 0
      %737 = vmatmul.mubr.bf16.gmra.mxu0 %v347
      %v738 = vpop.f32.mrf.mxu0
      %v739 = vadd.f32 %v362, %v738
      %v740 = vpop.f32.mrf.mxu0
      %v741 = vadd.f32 %v366, %v740
      %v742 = vpop.f32.mrf.mxu0
      %v743 = vadd.f32 %v362, %v742
      %v744 = vpop.f32.mrf.mxu0
      %v745 = vadd.f32 %v366, %v744
      %746 = vmatprep.mubr.bf16.mxu0 0
      %747 = vmatmul.mubr.bf16.gmra.mxu0 %v348
      %v748 = vpop.f32.mrf.mxu0
      %v749 = vadd.f32 %v362, %v748
      %v750 = vpop.f32.mrf.mxu0
      %v751 = vadd.f32 %v366, %v750
      %v752 = vpop.f32.mrf.mxu0
      %v753 = vadd.f32 %v362, %v752
      %v754 = vpop.f32.mrf.mxu0
      %v755 = vadd.f32 %v366, %v754
      %756 = vdwg.mxu0
      %v757 = vmax.f32 %v566, 0.0
      %v758 = vmax.f32 %v568, 0.0
      %v759 = vmax.f32 %v679, 0.0
      %v760 = vmax.f32 %v681, 0.0
      %v761 = vmax.f32 %v570, 0.0
      %v762 = vmax.f32 %v572, 0.0
      %v763 = vmax.f32 %v683, 0.0
      %v764 = vmax.f32 %v685, 0.0
      %v765 = vmax.f32 %v576, 0.0
      %v766 = vmax.f32 %v578, 0.0
      %v767 = vmax.f32 %v689, 0.0
      %v768 = vmax.f32 %v691, 0.0
      %v769 = vmax.f32 %v580, 0.0
      %v770 = vmax.f32 %v582, 0.0
      %v771 = vmax.f32 %v693, 0.0
      %v772 = vmax.f32 %v695, 0.0
      %v773 = vmax.f32 %v586, 0.0
      %v774 = vmax.f32 %v588, 0.0
      %v775 = vmax.f32 %v699, 0.0
      %v776 = vmax.f32 %v701, 0.0
      %v777 = vmax.f32 %v590, 0.0
      %v778 = vmax.f32 %v592, 0.0
      %v779 = vmax.f32 %v703, 0.0
      %v780 = vmax.f32 %v705, 0.0
      %v781 = vmax.f32 %v596, 0.0
      %v782 = vmax.f32 %v598, 0.0
      %v783 = vmax.f32 %v709, 0.0
      %v784 = vmax.f32 %v711, 0.0
      %v785 = vmax.f32 %v600, 0.0
      %v786 = vmax.f32 %v602, 0.0
      %v787 = vmax.f32 %v713, 0.0
      %v788 = vmax.f32 %v715, 0.0
      %v789 = vmax.f32 %v606, 0.0
      %v790 = vmax.f32 %v608, 0.0
      %v791 = vmax.f32 %v719, 0.0
      %v792 = vmax.f32 %v721, 0.0
      %v793 = vmax.f32 %v610, 0.0
      %v794 = vmax.f32 %v612, 0.0
      %v795 = vmax.f32 %v723, 0.0
      %v796 = vmax.f32 %v725, 0.0
      %v797 = vmax.f32 %v616, 0.0
      %v798 = vmax.f32 %v618, 0.0
      %v799 = vmax.f32 %v729, 0.0
      %v800 = vmax.f32 %v731, 0.0
      %v801 = vmax.f32 %v620, 0.0
      %v802 = vmax.f32 %v622, 0.0
      %v803 = vmax.f32 %v733, 0.0
      %v804 = vmax.f32 %v735, 0.0
      %v805 = vmax.f32 %v626, 0.0
      %v806 = vmax.f32 %v628, 0.0
      %v807 = vmax.f32 %v739, 0.0
      %v808 = vmax.f32 %v741, 0.0
      %v809 = vmax.f32 %v630, 0.0
      %v810 = vmax.f32 %v632, 0.0
      %v811 = vmax.f32 %v743, 0.0
      %v812 = vmax.f32 %v745, 0.0
      %v813 = vmax.f32 %v636, 0.0
      %v814 = vmax.f32 %v638, 0.0
      %v815 = vmax.f32 %v749, 0.0
      %v816 = vmax.f32 %v751, 0.0
      %v817 = vmax.f32 %v640, 0.0
      %v818 = vmax.f32 %v642, 0.0
      %v819 = vmax.f32 %v753, 0.0
      %v820 = vmax.f32 %v755, 0.0
      %v821 = vpack.c.bf16 %v761, %v757
      %v822 = vpack.c.bf16 %v762, %v758
      %v823 = vpack.c.bf16 %v763, %v759
      %v824 = vpack.c.bf16 %v764, %v760
      %v825 = vpack.c.bf16 %v769, %v765
      %v826 = vpack.c.bf16 %v770, %v766
      %v827 = vpack.c.bf16 %v771, %v767
      %v828 = vpack.c.bf16 %v772, %v768
      %v829 = vpack.c.bf16 %v777, %v773
      %v830 = vpack.c.bf16 %v778, %v774
      %v831 = vpack.c.bf16 %v779, %v775
      %v832 = vpack.c.bf16 %v780, %v776
      %v833 = vpack.c.bf16 %v785, %v781
      %v834 = vpack.c.bf16 %v786, %v782
      %v835 = vpack.c.bf16 %v787, %v783
      %v836 = vpack.c.bf16 %v788, %v784
      %v837 = vpack.c.bf16 %v793, %v789
      %v838 = vpack.c.bf16 %v794, %v790
      %v839 = vpack.c.bf16 %v795, %v791
      %v840 = vpack.c.bf16 %v796, %v792
      %v841 = vpack.c.bf16 %v801, %v797
      %v842 = vpack.c.bf16 %v802, %v798
      %v843 = vpack.c.bf16 %v803, %v799
      %v844 = vpack.c.bf16 %v804, %v800
      %v845 = vpack.c.bf16 %v809, %v805
      %v846 = vpack.c.bf16 %v810, %v806
      %v847 = vpack.c.bf16 %v811, %v807
      %v848 = vpack.c.bf16 %v812, %v808
      %v849 = vpack.c.bf16 %v817, %v813
      %v850 = vpack.c.bf16 %v818, %v814
      %v851 = vpack.c.bf16 %v819, %v815
      %v852 = vpack.c.bf16 %v820, %v816
      %v853 = vld [vmem:[%s4] sm:$0x1]
      %v855 = vlaneseq
      %v856 = vshrl.u32 %v855, 7
      %v857 = vsub.s32 0, %v856
      %v858 = vrot.slane %v853, %v857
      %v924 = vunpack.c.l.b16 %v261
      %v925 = vunpack.c.l.b16 %v262
      %v926 = vunpack.c.l.b16 %v263
      %v927 = vunpack.c.l.b16 %v264
      %v928 = vunpack.c.l.b16 %v265
      %v929 = vunpack.c.l.b16 %v266
      %v930 = vunpack.c.l.b16 %v267
      %v931 = vunpack.c.l.b16 %v268
      %v932 = vunpack.c.l.b16 %v269
      %v933 = vunpack.c.l.b16 %v270
      %v934 = vunpack.c.l.b16 %v271
      %v935 = vunpack.c.l.b16 %v272
      %v936 = vunpack.c.l.b16 %v273
      %v937 = vunpack.c.l.b16 %v274
      %v938 = vunpack.c.l.b16 %v275
      %v939 = vunpack.c.l.b16 %v276
      %v940 = vunpack.c.l.b16 %v277
      %v941 = vunpack.c.l.b16 %v278
      %v942 = vunpack.c.l.b16 %v279
      %v943 = vunpack.c.l.b16 %v280
      %v944 = vunpack.c.l.b16 %v281
      %v945 = vunpack.c.l.b16 %v282
      %v946 = vunpack.c.l.b16 %v283
      %v947 = vunpack.c.l.b16 %v284
      %v948 = vunpack.c.l.b16 %v285
      %v949 = vunpack.c.l.b16 %v286
      %v950 = vunpack.c.l.b16 %v287
      %v951 = vunpack.c.l.b16 %v288
      %v952 = vunpack.c.l.b16 %v289
      %v953 = vunpack.c.l.b16 %v290
      %v954 = vunpack.c.l.b16 %v291
      %v955 = vunpack.c.l.b16 %v292
      %v956 = vunpack.c.l.b16 %v293
      %v957 = vunpack.c.l.b16 %v294
      %v958 = vunpack.c.l.b16 %v295
      %v959 = vunpack.c.l.b16 %v296
      %v960 = vunpack.c.l.b16 %v297
      %v961 = vunpack.c.l.b16 %v298
      %v962 = vunpack.c.l.b16 %v299
      %v963 = vunpack.c.l.b16 %v300
      %v964 = vunpack.c.l.b16 %v301
      %v965 = vunpack.c.l.b16 %v302
      %v966 = vunpack.c.l.b16 %v303
      %v967 = vunpack.c.l.b16 %v304
      %v968 = vunpack.c.l.b16 %v305
      %v969 = vunpack.c.l.b16 %v306
      %v970 = vunpack.c.l.b16 %v307
      %v971 = vunpack.c.l.b16 %v308
      %v972 = vunpack.c.l.b16 %v309
      %v973 = vunpack.c.l.b16 %v310
      %v974 = vunpack.c.l.b16 %v311
      %v975 = vunpack.c.l.b16 %v312
      %v976 = vunpack.c.l.b16 %v313
      %v977 = vunpack.c.l.b16 %v314
      %v978 = vunpack.c.l.b16 %v315
      %v979 = vunpack.c.l.b16 %v316
      %v980 = vunpack.c.l.b16 %v317
      %v981 = vunpack.c.l.b16 %v318
      %v982 = vunpack.c.l.b16 %v319
      %v983 = vunpack.c.l.b16 %v320
      %v984 = vunpack.c.l.b16 %v321
      %v985 = vunpack.c.l.b16 %v322
      %v986 = vunpack.c.l.b16 %v323
      %v987 = vunpack.c.l.b16 %v324
      %v988 = vpack.c.b16 %v925, %v924
      %v989 = vpack.c.b16 %v927, %v926
      %v990 = vpack.c.b16 %v929, %v928
      %v991 = vpack.c.b16 %v931, %v930
      %v992 = vpack.c.b16 %v933, %v932
      %v993 = vpack.c.b16 %v935, %v934
      %v994 = vpack.c.b16 %v937, %v936
      %v995 = vpack.c.b16 %v939, %v938
      %v996 = vpack.c.b16 %v941, %v940
      %v997 = vpack.c.b16 %v943, %v942
      %v998 = vpack.c.b16 %v945, %v944
      %v999 = vpack.c.b16 %v947, %v946
      %v1000 = vpack.c.b16 %v949, %v948
      %v1001 = vpack.c.b16 %v951, %v950
      %v1002 = vpack.c.b16 %v953, %v952
      %v1003 = vpack.c.b16 %v955, %v954
      %v1004 = vpack.c.b16 %v957, %v956
      %v1005 = vpack.c.b16 %v959, %v958
      %v1006 = vpack.c.b16 %v961, %v960
      %v1007 = vpack.c.b16 %v963, %v962
      %v1008 = vpack.c.b16 %v965, %v964
      %v1009 = vpack.c.b16 %v967, %v966
      %v1010 = vpack.c.b16 %v969, %v968
      %v1011 = vpack.c.b16 %v971, %v970
      %v1012 = vpack.c.b16 %v973, %v972
      %v1013 = vpack.c.b16 %v975, %v974
      %v1014 = vpack.c.b16 %v977, %v976
      %v1015 = vpack.c.b16 %v979, %v978
      %v1016 = vpack.c.b16 %v981, %v980
      %v1017 = vpack.c.b16 %v983, %v982
      %v1018 = vpack.c.b16 %v985, %v984
      %v1019 = vpack.c.b16 %v987, %v986
      %1052 = vmatprep.subr.bf16.mxu0 0
      %1053 = vmatpush1.bf16.msra.mxu0 %v995
      %1054 = vmatprep.subr.bf16.mxu0 0
      %1055 = vmatpush1.bf16.msra.mxu0 %v994
      %1056 = vmatprep.subr.bf16.mxu0 0
      %1057 = vmatpush1.bf16.msra.mxu0 %v993
      %1058 = vmatprep.subr.bf16.mxu0 0
      %1059 = vmatpush1.bf16.msra.mxu0 %v992
      %1060 = vmatprep.subr.bf16.mxu0 0
      %1061 = vmatpush1.bf16.msra.mxu0 %v991
      %1062 = vmatprep.subr.bf16.mxu0 0
      %1063 = vmatpush1.bf16.msra.mxu0 %v990
      %1064 = vmatprep.subr.bf16.mxu0 0
      %1065 = vmatpush1.bf16.msra.mxu0 %v989
      %1066 = vmatprep.subr.bf16.mxu0 0
      %1067 = vmatpush1.bf16.msra.mxu0 %v988
      %1068 = vmatprep.subr.bf16.mxu0 0
      %1069 = vmatpush2.bf16.msra.mxu0 %v1003
      %1070 = vmatprep.subr.bf16.mxu0 0
      %1071 = vmatpush2.bf16.msra.mxu0 %v1002
      %1072 = vmatprep.subr.bf16.mxu0 0
      %1073 = vmatpush2.bf16.msra.mxu0 %v1001
      %1074 = vmatprep.subr.bf16.mxu0 0
      %1075 = vmatpush2.bf16.msra.mxu0 %v1000
      %1076 = vmatprep.subr.bf16.mxu0 0
      %1077 = vmatpush2.bf16.msra.mxu0 %v999
      %1078 = vmatprep.subr.bf16.mxu0 0
      %1079 = vmatpush2.bf16.msra.mxu0 %v998
      %1080 = vmatprep.subr.bf16.mxu0 0
      %1081 = vmatpush2.bf16.msra.mxu0 %v997
      %1082 = vmatprep.subr.bf16.mxu0 0
      %1083 = vmatpush2.bf16.msra.mxu0 %v996
      %1084 = vmatprep.mubr.bf16.mxu0 %v822
      %1085 = vmatmul.mubr.bf16.gmra.mxu0 %v821
      %v1086 = vpop.f32.mrf.mxu0
      %v1087 = vadd.f32 %v858, %v1086
      %v1088 = vpop.f32.mrf.mxu0
      %v1089 = vpop.f32.mrf.mxu0
      %v1090 = vadd.f32 %v858, %v1089
      %v1091 = vpop.f32.mrf.mxu0
      %1092 = vmatprep.mubr.bf16.mxu0 %v826
      %1093 = vmatmul.mubr.bf16.gmra.mxu0 %v825
      %v1094 = vpop.f32.mrf.mxu0
      %v1095 = vadd.f32 %v858, %v1094
      %v1096 = vpop.f32.mrf.mxu0
      %v1097 = vpop.f32.mrf.mxu0
      %v1098 = vadd.f32 %v858, %v1097
      %v1099 = vpop.f32.mrf.mxu0
      %1100 = vmatprep.mubr.bf16.mxu0 %v830
      %1101 = vmatmul.mubr.bf16.gmra.mxu0 %v829
      %v1102 = vpop.f32.mrf.mxu0
      %v1103 = vadd.f32 %v858, %v1102
      %v1104 = vpop.f32.mrf.mxu0
      %v1105 = vpop.f32.mrf.mxu0
      %v1106 = vadd.f32 %v858, %v1105
      %v1107 = vpop.f32.mrf.mxu0
      %1108 = vmatprep.mubr.bf16.mxu0 %v834
      %1109 = vmatmul.mubr.bf16.gmra.mxu0 %v833
      %v1110 = vpop.f32.mrf.mxu0
      %v1111 = vadd.f32 %v858, %v1110
      %v1112 = vpop.f32.mrf.mxu0
      %v1113 = vpop.f32.mrf.mxu0
      %v1114 = vadd.f32 %v858, %v1113
      %v1115 = vpop.f32.mrf.mxu0
      %1116 = vmatprep.mubr.bf16.mxu0 %v838
      %1117 = vmatmul.mubr.bf16.gmra.mxu0 %v837
      %v1118 = vpop.f32.mrf.mxu0
      %v1119 = vadd.f32 %v858, %v1118
      %v1120 = vpop.f32.mrf.mxu0
      %v1121 = vpop.f32.mrf.mxu0
      %v1122 = vadd.f32 %v858, %v1121
      %v1123 = vpop.f32.mrf.mxu0
      %1124 = vmatprep.mubr.bf16.mxu0 %v842
      %1125 = vmatmul.mubr.bf16.gmra.mxu0 %v841
      %v1126 = vpop.f32.mrf.mxu0
      %v1127 = vadd.f32 %v858, %v1126
      %v1128 = vpop.f32.mrf.mxu0
      %v1129 = vpop.f32.mrf.mxu0
      %v1130 = vadd.f32 %v858, %v1129
      %v1131 = vpop.f32.mrf.mxu0
      %1132 = vmatprep.mubr.bf16.mxu0 %v846
      %1133 = vmatmul.mubr.bf16.gmra.mxu0 %v845
      %v1134 = vpop.f32.mrf.mxu0
      %v1135 = vadd.f32 %v858, %v1134
      %v1136 = vpop.f32.mrf.mxu0
      %v1137 = vpop.f32.mrf.mxu0
      %v1138 = vadd.f32 %v858, %v1137
      %v1139 = vpop.f32.mrf.mxu0
      %1140 = vmatprep.mubr.bf16.mxu0 %v850
      %1141 = vmatmul.mubr.bf16.gmra.mxu0 %v849
      %v1142 = vpop.f32.mrf.mxu0
      %v1143 = vadd.f32 %v858, %v1142
      %v1144 = vpop.f32.mrf.mxu0
      %v1145 = vpop.f32.mrf.mxu0
      %v1146 = vadd.f32 %v858, %v1145
      %v1147 = vpop.f32.mrf.mxu0
      %1148 = vdwg.mxu0
      %1149 = vmatprep.subr.bf16.mxu0 0
      %1150 = vmatpush1.bf16.msra.mxu0 %v1011
      %1151 = vmatprep.subr.bf16.mxu0 0
      %1152 = vmatpush1.bf16.msra.mxu0 %v1010
      %1153 = vmatprep.subr.bf16.mxu0 0
      %1154 = vmatpush1.bf16.msra.mxu0 %v1009
      %1155 = vmatprep.subr.bf16.mxu0 0
      %1156 = vmatpush1.bf16.msra.mxu0 %v1008
      %1157 = vmatprep.subr.bf16.mxu0 0
      %1158 = vmatpush1.bf16.msra.mxu0 %v1007
      %1159 = vmatprep.subr.bf16.mxu0 0
      %1160 = vmatpush1.bf16.msra.mxu0 %v1006
      %1161 = vmatprep.subr.bf16.mxu0 0
      %1162 = vmatpush1.bf16.msra.mxu0 %v1005
      %1163 = vmatprep.subr.bf16.mxu0 0
      %1164 = vmatpush1.bf16.msra.mxu0 %v1004
      %1165 = vmatprep.subr.bf16.mxu0 0
      %1166 = vmatpush2.bf16.msra.mxu0 %v1019
      %1167 = vmatprep.subr.bf16.mxu0 0
      %1168 = vmatpush2.bf16.msra.mxu0 %v1018
      %1169 = vmatprep.subr.bf16.mxu0 0
      %1170 = vmatpush2.bf16.msra.mxu0 %v1017
      %1171 = vmatprep.subr.bf16.mxu0 0
      %1172 = vmatpush2.bf16.msra.mxu0 %v1016
      %1173 = vmatprep.subr.bf16.mxu0 0
      %1174 = vmatpush2.bf16.msra.mxu0 %v1015
      %1175 = vmatprep.subr.bf16.mxu0 0
      %1176 = vmatpush2.bf16.msra.mxu0 %v1014
      %1177 = vmatprep.subr.bf16.mxu0 0
      %1178 = vmatpush2.bf16.msra.mxu0 %v1013
      %1179 = vmatprep.subr.bf16.mxu0 0
      %1180 = vmatpush2.bf16.msra.mxu0 %v1012
      %1181 = vmatprep.mubr.bf16.mxu0 %v824
      %1182 = vmatmul.mubr.bf16.gmra.mxu0 %v823
      %v1183 = vpop.f32.mrf.mxu0
      %v1184 = vadd.f32 %v1087, %v1183
      %v1185 = vpop.f32.mrf.mxu0
      %v1186 = vpop.f32.mrf.mxu0
      %v1187 = vadd.f32 %v1090, %v1186
      %v1188 = vpop.f32.mrf.mxu0
      %1189 = vmatprep.mubr.bf16.mxu0 %v828
      %1190 = vmatmul.mubr.bf16.gmra.mxu0 %v827
      %v1191 = vpop.f32.mrf.mxu0
      %v1192 = vadd.f32 %v1095, %v1191
      %v1193 = vpop.f32.mrf.mxu0
      %v1194 = vpop.f32.mrf.mxu0
      %v1195 = vadd.f32 %v1098, %v1194
      %v1196 = vpop.f32.mrf.mxu0
      %1197 = vmatprep.mubr.bf16.mxu0 %v832
      %1198 = vmatmul.mubr.bf16.gmra.mxu0 %v831
      %v1199 = vpop.f32.mrf.mxu0
      %v1200 = vadd.f32 %v1103, %v1199
      %v1201 = vpop.f32.mrf.mxu0
      %v1202 = vpop.f32.mrf.mxu0
      %v1203 = vadd.f32 %v1106, %v1202
      %v1204 = vpop.f32.mrf.mxu0
      %1205 = vmatprep.mubr.bf16.mxu0 %v836
      %1206 = vmatmul.mubr.bf16.gmra.mxu0 %v835
      %v1207 = vpop.f32.mrf.mxu0
      %v1208 = vadd.f32 %v1111, %v1207
      %v1209 = vpop.f32.mrf.mxu0
      %v1210 = vpop.f32.mrf.mxu0
      %v1211 = vadd.f32 %v1114, %v1210
      %v1212 = vpop.f32.mrf.mxu0
      %1213 = vmatprep.mubr.bf16.mxu0 %v840
      %1214 = vmatmul.mubr.bf16.gmra.mxu0 %v839
      %v1215 = vpop.f32.mrf.mxu0
      %v1216 = vadd.f32 %v1119, %v1215
      %v1217 = vpop.f32.mrf.mxu0
      %v1218 = vpop.f32.mrf.mxu0
      %v1219 = vadd.f32 %v1122, %v1218
      %v1220 = vpop.f32.mrf.mxu0
      %1221 = vmatprep.mubr.bf16.mxu0 %v844
      %1222 = vmatmul.mubr.bf16.gmra.mxu0 %v843
      %v1223 = vpop.f32.mrf.mxu0
      %v1224 = vadd.f32 %v1127, %v1223
      %v1225 = vpop.f32.mrf.mxu0
      %v1226 = vpop.f32.mrf.mxu0
      %v1227 = vadd.f32 %v1130, %v1226
      %v1228 = vpop.f32.mrf.mxu0
      %1229 = vmatprep.mubr.bf16.mxu0 %v848
      %1230 = vmatmul.mubr.bf16.gmra.mxu0 %v847
      %v1231 = vpop.f32.mrf.mxu0
      %v1232 = vadd.f32 %v1135, %v1231
      %v1233 = vpop.f32.mrf.mxu0
      %v1234 = vpop.f32.mrf.mxu0
      %v1235 = vadd.f32 %v1138, %v1234
      %v1236 = vpop.f32.mrf.mxu0
      %1237 = vmatprep.mubr.bf16.mxu0 %v852
      %1238 = vmatmul.mubr.bf16.gmra.mxu0 %v851
      %v1239 = vpop.f32.mrf.mxu0
      %v1240 = vadd.f32 %v1143, %v1239
      %v1241 = vpop.f32.mrf.mxu0
      %v1242 = vpop.f32.mrf.mxu0
      %v1243 = vadd.f32 %v1146, %v1242
      %v1244 = vpop.f32.mrf.mxu0
      %1245 = vdwg.mxu0
      %1246 = vst [vmem:[%s226] sm:$0xff] %v1184
      %1247 = vst [vmem:[%s226 + $0x8] sm:$0xff] %v1187
      %1248 = vst [vmem:[%s226 + $0x10] sm:$0xff] %v1192
      %1249 = vst [vmem:[%s226 + $0x18] sm:$0xff] %v1195
      %1250 = vst [vmem:[%s226 + $0x20] sm:$0xff] %v1200
      %1251 = vst [vmem:[%s226 + $0x28] sm:$0xff] %v1203
      %1252 = vst [vmem:[%s226 + $0x30] sm:$0xff] %v1208
      %1253 = vst [vmem:[%s226 + $0x38] sm:$0xff] %v1211
      %1254 = vst [vmem:[%s226 + $0x40] sm:$0xff] %v1216
      %1255 = vst [vmem:[%s226 + $0x48] sm:$0xff] %v1219
      %1256 = vst [vmem:[%s226 + $0x50] sm:$0xff] %v1224
      %1257 = vst [vmem:[%s226 + $0x58] sm:$0xff] %v1227
      %1258 = vst [vmem:[%s226 + $0x60] sm:$0xff] %v1232
      %1259 = vst [vmem:[%s226 + $0x68] sm:$0xff] %v1235
      %1260 = vst [vmem:[%s226 + $0x70] sm:$0xff] %v1240
      %1261 = vst [vmem:[%s226 + $0x78] sm:$0xff] %v1243
      %s1262 = smul.u32 16, %s16
      %p1263 = scmp.lt.s32.totalorder %s1262, 63
      %s1264 = scalar_select %p1263, %s1262, 63
      %s1265 = smul.addr %s1264, 8
      %s1266 = scalar_lea.vmem %s5, %s1265
      // Predicated region
      $region41: #{linear_block_forward.1} parent=39 // pred_check
        %p1267 = pneg %p144
      $region42: #{linear_block_forward.1} parent=39 // pred_check_branch
        %1269 = sbr.rel (%p1267) target = $region44
      $region43: #{linear_block_forward.1} parent=39 // pred_region
        %s1270 = smul.u32 16, %s16
      $region44: #{linear_block_forward.1} parent=39 // pred_fallthru
        _
    $region40: #{linear_block_forward.1} parent=5 // pred_fallthru
      _
    %p1271 = scmp.le.s32.totalorder 2, %s11
    // Predicated region
    $region45: #{linear_block_forward.1} parent=5 // pred_check
      %p1272 = pneg %p1271
    $region46: #{linear_block_forward.1} parent=5 // pred_check_branch
      %1274 = sbr.rel (%p1272) target = $region48
    $region47: #{linear_block_forward.1} parent=5 // pred_region
      %s1275 = ssub.s32 %s11, 2
      // Predicated region
      $region49: #{linear_block_forward.1} parent=47 // pred_check
        %p1276 = pneg %p150
      $region50: #{linear_block_forward.1} parent=47 // pred_check_branch
        %1278 = sbr.rel (%p1276) target = $region52
      $region51: #{linear_block_forward.1} parent=47 // pred_region
        %s1279 = smul.u32 16, %s17
        %p1280 = scmp.lt.s32.totalorder %s1279, 63
        %s1281 = scalar_select %p1280, %s1279, 63
        %s1282 = smul.addr %s1281, 8
        %s1283 = scalar_lea.vmem %s5, %s1282
      $region52: #{linear_block_forward.1} parent=47 // pred_fallthru
        _
    $region48: #{linear_block_forward.1} parent=5 // pred_fallthru
      _
  $region6: #{linear_block_forward.1} parent=0 // loop_footer
    %s15 = sadd.s32 1, %s11
  $region7: #{linear_block_forward.1} parent=0 // loop_footer_branch
    %10 = sbr.rel target = $region3
  $region8: #{linear_block_forward.1} parent=0 // loop_exit
    _

</llo_original>
